<compile_context>
chip_gen: v6e
topology: v6e:2x2x1
jax: 0.10.0
libtpu: 0.0.40
codegen_flags: <defaults>
</compile_context>

<pallas_src>
import functools

import jax
import jax.numpy as jnp
from jax.experimental import pallas as pl
from jax.experimental.pallas import tpu as pltpu

NEG_SLOPE = 0.01  # F.leaky_relu default negative_slope


def _round_up(x, m):
    return ((x + m - 1) // m) * m


def _pad_dim(d):
    """Pad any layer width to a lane/MXU-friendly multiple of 128."""
    return max(128, _round_up(d, 128))


def _leaky_relu(x):
    return jnp.where(x > 0, x, NEG_SLOPE * x)


def _sae_kernel(x_ref,
                w1, b1, w2, b2, w3, b3, w4, b4,   # encoder
                w5, b5, w6, b6, w7, b7, w8, b8,   # decoder
                out_ref, *, compute_dtype):
    def layer(h, w, b, act):
        y = jnp.dot(h.astype(compute_dtype), w[...],
                    preferred_element_type=jnp.float32) + b[...]
        return _leaky_relu(y) if act else y

    h = x_ref[...]
    # ----- encode -----
    h = layer(h, w1, b1, True)
    h = layer(h, w2, b2, True)
    h = layer(h, w3, b3, True)
    z = layer(h, w4, b4, False)          # en4: no activation
    # ----- decode -----
    h = layer(z, w5, b5, True)
    h = layer(h, w6, b6, True)
    h = layer(h, w7, b7, True)
    out_ref[...] = layer(h, w8, b8, False).astype(out_ref.dtype)   # de4


def _build_call(params, Bp, TB, Fp, vmem_limit, compute_dtype, single_buffer_params):
    grid = (Bp // TB,)

    x_spec = pl.BlockSpec((TB, Fp), lambda i: (i, 0))
    out_spec = pl.BlockSpec((TB, Fp), lambda i: (i, 0))

    # Constant block index => params DMA'd once and stay VMEM-resident across
    # all batch tiles; Buffered(1) avoids pointless double-buffering of them.
    if single_buffer_params:
        param_specs = [pl.BlockSpec(p.shape, lambda i: (0, 0),
                                    pipeline_mode=pl.Buffered(1))
                       for p in params]
    else:
        param_specs = [pl.BlockSpec(p.shape, lambda i: (0, 0)) for p in params]

    flops = 2 * Bp * sum(int(params[2 * i].shape[0]) * int(params[2 * i].shape[1])
                         for i in range(8))
    bytes_accessed = (2 * Bp * Fp * 4
                      + sum(int(p.size) * p.dtype.itemsize for p in params))

    return pl.pallas_call(
        functools.partial(_sae_kernel, compute_dtype=compute_dtype),
        out_shape=jax.ShapeDtypeStruct((Bp, Fp), jnp.float32),
        grid=grid,
        in_specs=[x_spec] + param_specs,
        out_specs=out_spec,
        compiler_params=pltpu.CompilerParams(
            dimension_semantics=("parallel",),
            vmem_limit_bytes=vmem_limit),
        cost_estimate=pl.CostEstimate(flops=flops, transcendentals=0,
                                      bytes_accessed=bytes_accessed),
    )


def george_sae_forward(x, params, *, batch_tile=None, use_bf16=False,
                       vmem_budget_bytes=24 << 20):
    """x: (B, n_features) f32; params: flat [w1,b1,...,w8,b8] with
    w_i shaped (in_p, out_p) and b_i shaped (1, out_p), all dims padded to
    multiples of 128 (see init_params). Returns (B, n_features) f32."""
    B, n_features = x.shape
    Fp = params[0].shape[0]                     # padded feature width
    assert Fp >= n_features and Fp % 128 == 0

    if use_bf16:
        # bf16 weights + bf16 matmul inputs, f32 accumulation on the MXU.
        params = [p.astype(jnp.bfloat16) if i % 2 == 0 else p
                  for i, p in enumerate(params)]
        compute_dtype = jnp.bfloat16
    else:
        compute_dtype = jnp.float32

    param_bytes = sum(int(p.size) * p.dtype.itemsize for p in params)

    # ---- batch tile from a VMEM budget (not a fixed 512) ----
    per_row = 4 * Fp * 4 + 2 * 256 * 4          # dbl-buffered x/out + live acts
    avail = max(vmem_budget_bytes - param_bytes, 1 << 20)
    tb_cap = max(8, (avail // per_row) // 8 * 8)
    TB = 2048 if batch_tile is None else batch_tile
    TB = max(8, min(_round_up(TB, 8), tb_cap, _round_up(B, 8)))
    # Guarantee >= 2 grid steps when the batch allows it so the "parallel"
    # batch axis actually feeds both v7x TensorCores.
    if _round_up(B, TB) // TB < 2 and B > 8:
        TB = _round_up(-(-B // 2), 8)
    Bp = _round_up(B, TB)

    # ---- lane-dense padding of x (rows to Bp, columns to Fp) ----
    x = jnp.pad(x.astype(jnp.float32), ((0, Bp - B), (0, Fp - n_features)))

    # ---- explicit VMEM limit (v5e's default scoped VMEM is 16 MiB) ----
    io_bytes = 2 * 2 * TB * Fp * 4              # x + out, double-buffered
    act_bytes = TB * 1024 * 4                   # generous intermediate headroom
    needed = 2 * param_bytes + io_bytes + act_bytes + (4 << 20)
    vmem_limit = int(min(64 << 20, max(needed + needed // 2, 32 << 20)))

    try:
        out = _build_call(params, Bp, TB, Fp, vmem_limit,
                          compute_dtype, single_buffer_params=True)(x, *params)
        out = jax.block_until_ready(out)
    except Exception:
        # Fallback: default (double-buffered) param specs if Buffered(1)
        # is rejected by this Pallas/Mosaic version.
        out = _build_call(params, Bp, TB, Fp, vmem_limit,
                          compute_dtype, single_buffer_params=False)(x, *params)

    return out[:B, :n_features]


def init_params(key, n_features, z_dim):
    """Deterministic init mimicking nn.Linear's U(-1/sqrt(fan_in), 1/sqrt(fan_in)).
    Weights pre-transposed to (in, out); biases (1, out). ALL dims (including
    the external n_features ones) are zero-padded to multiples of 128 so x/out
    blocks are lane-dense; zero padding does not change the logical forward."""
    logical = [(n_features, 200), (200, 100), (100, 50), (50, z_dim),   # encoder
               (z_dim, 50), (50, 100), (100, 200), (200, n_features)]   # decoder
    params = []
    for fan_in, fan_out in logical:
        fi_p, fo_p = _pad_dim(fan_in), _pad_dim(fan_out)
        key, kw, kb = jax.random.split(key, 3)
        bound = 1.0 / jnp.sqrt(jnp.float32(fan_in))
        w = jax.random.uniform(kw, (fan_in, fan_out), jnp.float32, -bound, bound)
        b = jax.random.uniform(kb, (1, fan_out), jnp.float32, -bound, bound)
        # Zero-pad: padded rows multiply zero activations, padded columns stay
        # zero through bias-add + leaky_relu -> no contamination of real cols.
        w = jnp.pad(w, ((0, fi_p - fan_in), (0, fo_p - fan_out)))
        b = jnp.pad(b, ((0, 0), (0, fo_p - fan_out)))
        params += [w, b]
    return params


def _reference_forward(x, params, n_features):
    """Plain-JAX reference (same padded params) for correctness checking."""
    Fp = params[0].shape[0]
    h = jnp.pad(x, ((0, 0), (0, Fp - x.shape[1])))
    for i in range(8):
        w, b = params[2 * i], params[2 * i + 1]
        h = h @ w + b
        if i not in (3, 7):                      # en4 / de4 have no activation
            h = _leaky_relu(h)
    return h[:, :n_features]


if __name__ == "__main__":
    B, n_features, z_dim = 8, 16, 4

    key = jax.random.PRNGKey(0)
    kx, kp = jax.random.split(key)
    x = jax.random.normal(kx, (B, n_features), dtype=jnp.float32)
    params = init_params(kp, n_features, z_dim)

    out = george_sae_forward(x, params)
    out = jax.block_until_ready(out)
    assert out.shape == (B, n_features), out.shape

    ref = _reference_forward(x, params, n_features)
    err = float(jnp.max(jnp.abs(out - ref)))
    assert jnp.allclose(out, ref, atol=1e-4, rtol=1e-4), err

    # Exercise the bf16 MXU path (v6e/v7x headline rate); loose check only,
    # since the reference is f32.
    out_bf16 = george_sae_forward(x, params, use_bf16=True)
    out_bf16 = jax.block_until_ready(out_bf16)
    assert out_bf16.shape == (B, n_features)
    assert bool(jnp.all(jnp.isfinite(out_bf16)))

    print("KERNEL_OK")
</pallas_src>

<mosaic_0001>
module attributes {stable_mosaic.version = 11 : i64} {
  func.func @_sae_kernel(%arg0: i32, %arg1: memref<8x128xf32, #tpu.memory_space<vmem>>, %arg2: memref<128x256xf32, #tpu.memory_space<vmem>>, %arg3: memref<1x256xf32, #tpu.memory_space<vmem>>, %arg4: memref<256x128xf32, #tpu.memory_space<vmem>>, %arg5: memref<1x128xf32, #tpu.memory_space<vmem>>, %arg6: memref<128x128xf32, #tpu.memory_space<vmem>>, %arg7: memref<1x128xf32, #tpu.memory_space<vmem>>, %arg8: memref<128x128xf32, #tpu.memory_space<vmem>>, %arg9: memref<1x128xf32, #tpu.memory_space<vmem>>, %arg10: memref<128x128xf32, #tpu.memory_space<vmem>>, %arg11: memref<1x128xf32, #tpu.memory_space<vmem>>, %arg12: memref<128x128xf32, #tpu.memory_space<vmem>>, %arg13: memref<1x128xf32, #tpu.memory_space<vmem>>, %arg14: memref<128x256xf32, #tpu.memory_space<vmem>>, %arg15: memref<1x256xf32, #tpu.memory_space<vmem>>, %arg16: memref<256x128xf32, #tpu.memory_space<vmem>>, %arg17: memref<1x128xf32, #tpu.memory_space<vmem>>, %arg18: memref<8x128xf32, #tpu.memory_space<vmem>>) attributes {dimension_semantics = [#tpu.dimension_semantics<parallel>], iteration_bounds = array<i64: 1>, scalar_prefetch = 0 : i64, scratch_operands = 0 : i64, tpu.core_type = #tpu.core_type<tc>, window_params = [{transform_indices = @transform_0, window_bounds = array<i64: 8, 128>}, {pipeline_mode = #tpu.pipeline_mode<synchronous>, transform_indices = @transform_1, window_bounds = array<i64: 128, 256>}, {pipeline_mode = #tpu.pipeline_mode<synchronous>, transform_indices = @transform_2, window_bounds = array<i64: 1, 256>}, {pipeline_mode = #tpu.pipeline_mode<synchronous>, transform_indices = @transform_3, window_bounds = array<i64: 256, 128>}, {pipeline_mode = #tpu.pipeline_mode<synchronous>, transform_indices = @transform_4, window_bounds = array<i64: 1, 128>}, {pipeline_mode = #tpu.pipeline_mode<synchronous>, transform_indices = @transform_5, window_bounds = array<i64: 128, 128>}, {pipeline_mode = #tpu.pipeline_mode<synchronous>, transform_indices = @transform_6, window_bounds = array<i64: 1, 128>}, {pipeline_mode = #tpu.pipeline_mode<synchronous>, transform_indices = @transform_7, window_bounds = array<i64: 128, 128>}, {pipeline_mode = #tpu.pipeline_mode<synchronous>, transform_indices = @transform_8, window_bounds = array<i64: 1, 128>}, {pipeline_mode = #tpu.pipeline_mode<synchronous>, transform_indices = @transform_9, window_bounds = array<i64: 128, 128>}, {pipeline_mode = #tpu.pipeline_mode<synchronous>, transform_indices = @transform_10, window_bounds = array<i64: 1, 128>}, {pipeline_mode = #tpu.pipeline_mode<synchronous>, transform_indices = @transform_11, window_bounds = array<i64: 128, 128>}, {pipeline_mode = #tpu.pipeline_mode<synchronous>, transform_indices = @transform_12, window_bounds = array<i64: 1, 128>}, {pipeline_mode = #tpu.pipeline_mode<synchronous>, transform_indices = @transform_13, window_bounds = array<i64: 128, 256>}, {pipeline_mode = #tpu.pipeline_mode<synchronous>, transform_indices = @transform_14, window_bounds = array<i64: 1, 256>}, {pipeline_mode = #tpu.pipeline_mode<synchronous>, transform_indices = @transform_15, window_bounds = array<i64: 256, 128>}, {pipeline_mode = #tpu.pipeline_mode<synchronous>, transform_indices = @transform_16, window_bounds = array<i64: 1, 128>}, {transform_indices = @transform_17, window_bounds = array<i64: 8, 128>}]} {
    %c0 = arith.constant 0 : index
    %c0_0 = arith.constant 0 : index
    %0 = vector.load %arg1[%c0, %c0_0] : memref<8x128xf32, #tpu.memory_space<vmem>>, vector<8x128xf32>
    %c0_1 = arith.constant 0 : index
    %c0_2 = arith.constant 0 : index
    %1 = vector.load %arg2[%c0_1, %c0_2] : memref<128x256xf32, #tpu.memory_space<vmem>>, vector<128x256xf32>
    %cst = arith.constant dense<0.000000e+00> : vector<8x256xf32>
    %2 = tpu.matmul %0, %1, %cst {dimension_numbers = #tpu.dot_dimension_numbers<[1], [0], [0], [1], [0, 0, 1, 1], [], []>} : vector<8x128xf32>, vector<128x256xf32>, vector<8x256xf32> -> vector<8x256xf32>
    %c0_3 = arith.constant 0 : index
    %c0_4 = arith.constant 0 : index
    %3 = vector.load %arg3[%c0_3, %c0_4] : memref<1x256xf32, #tpu.memory_space<vmem>>, vector<1x256xf32>
    %4 = vector.broadcast %3 : vector<1x256xf32> to vector<8x256xf32>
    %5 = arith.addf %2, %4 : vector<8x256xf32>
    %cst_5 = arith.constant 0.000000e+00 : f32
    %6 = vector.broadcast %cst_5 : f32 to vector<8x256xf32>
    %7 = arith.cmpf ogt, %5, %6 : vector<8x256xf32>
    %cst_6 = arith.constant 0.00999999977 : f32
    %8 = vector.broadcast %cst_6 : f32 to vector<8x256xf32>
    %9 = arith.mulf %8, %5 : vector<8x256xf32>
    %10 = arith.select %7, %5, %9 : vector<8x256xi1>, vector<8x256xf32>
    %c0_7 = arith.constant 0 : index
    %c0_8 = arith.constant 0 : index
    %11 = vector.load %arg4[%c0_7, %c0_8] : memref<256x128xf32, #tpu.memory_space<vmem>>, vector<256x128xf32>
    %cst_9 = arith.constant dense<0.000000e+00> : vector<8x128xf32>
    %12 = tpu.matmul %10, %11, %cst_9 {dimension_numbers = #tpu.dot_dimension_numbers<[1], [0], [0], [1], [0, 0, 1, 1], [], []>} : vector<8x256xf32>, vector<256x128xf32>, vector<8x128xf32> -> vector<8x128xf32>
    %c0_10 = arith.constant 0 : index
    %c0_11 = arith.constant 0 : index
    %13 = vector.load %arg5[%c0_10, %c0_11] : memref<1x128xf32, #tpu.memory_space<vmem>>, vector<1x128xf32>
    %14 = vector.broadcast %13 : vector<1x128xf32> to vector<8x128xf32>
    %15 = arith.addf %12, %14 : vector<8x128xf32>
    %cst_12 = arith.constant 0.000000e+00 : f32
    %16 = vector.broadcast %cst_12 : f32 to vector<8x128xf32>
    %17 = arith.cmpf ogt, %15, %16 : vector<8x128xf32>
    %cst_13 = arith.constant 0.00999999977 : f32
    %18 = vector.broadcast %cst_13 : f32 to vector<8x128xf32>
    %19 = arith.mulf %18, %15 : vector<8x128xf32>
    %20 = arith.select %17, %15, %19 : vector<8x128xi1>, vector<8x128xf32>
    %c0_14 = arith.constant 0 : index
    %c0_15 = arith.constant 0 : index
    %21 = vector.load %arg6[%c0_14, %c0_15] : memref<128x128xf32, #tpu.memory_space<vmem>>, vector<128x128xf32>
    %cst_16 = arith.constant dense<0.000000e+00> : vector<8x128xf32>
    %22 = tpu.matmul %20, %21, %cst_16 {dimension_numbers = #tpu.dot_dimension_numbers<[1], [0], [0], [1], [0, 0, 1, 1], [], []>} : vector<8x128xf32>, vector<128x128xf32>, vector<8x128xf32> -> vector<8x128xf32>
    %c0_17 = arith.constant 0 : index
    %c0_18 = arith.constant 0 : index
    %23 = vector.load %arg7[%c0_17, %c0_18] : memref<1x128xf32, #tpu.memory_space<vmem>>, vector<1x128xf32>
    %24 = vector.broadcast %23 : vector<1x128xf32> to vector<8x128xf32>
    %25 = arith.addf %22, %24 : vector<8x128xf32>
    %cst_19 = arith.constant 0.000000e+00 : f32
    %26 = vector.broadcast %cst_19 : f32 to vector<8x128xf32>
    %27 = arith.cmpf ogt, %25, %26 : vector<8x128xf32>
    %cst_20 = arith.constant 0.00999999977 : f32
    %28 = vector.broadcast %cst_20 : f32 to vector<8x128xf32>
    %29 = arith.mulf %28, %25 : vector<8x128xf32>
    %30 = arith.select %27, %25, %29 : vector<8x128xi1>, vector<8x128xf32>
    %c0_21 = arith.constant 0 : index
    %c0_22 = arith.constant 0 : index
    %31 = vector.load %arg8[%c0_21, %c0_22] : memref<128x128xf32, #tpu.memory_space<vmem>>, vector<128x128xf32>
    %cst_23 = arith.constant dense<0.000000e+00> : vector<8x128xf32>
    %32 = tpu.matmul %30, %31, %cst_23 {dimension_numbers = #tpu.dot_dimension_numbers<[1], [0], [0], [1], [0, 0, 1, 1], [], []>} : vector<8x128xf32>, vector<128x128xf32>, vector<8x128xf32> -> vector<8x128xf32>
    %c0_24 = arith.constant 0 : index
    %c0_25 = arith.constant 0 : index
    %33 = vector.load %arg9[%c0_24, %c0_25] : memref<1x128xf32, #tpu.memory_space<vmem>>, vector<1x128xf32>
    %34 = vector.broadcast %33 : vector<1x128xf32> to vector<8x128xf32>
    %35 = arith.addf %32, %34 : vector<8x128xf32>
    %c0_26 = arith.constant 0 : index
    %c0_27 = arith.constant 0 : index
    %36 = vector.load %arg10[%c0_26, %c0_27] : memref<128x128xf32, #tpu.memory_space<vmem>>, vector<128x128xf32>
    %cst_28 = arith.constant dense<0.000000e+00> : vector<8x128xf32>
    %37 = tpu.matmul %35, %36, %cst_28 {dimension_numbers = #tpu.dot_dimension_numbers<[1], [0], [0], [1], [0, 0, 1, 1], [], []>} : vector<8x128xf32>, vector<128x128xf32>, vector<8x128xf32> -> vector<8x128xf32>
    %c0_29 = arith.constant 0 : index
    %c0_30 = arith.constant 0 : index
    %38 = vector.load %arg11[%c0_29, %c0_30] : memref<1x128xf32, #tpu.memory_space<vmem>>, vector<1x128xf32>
    %39 = vector.broadcast %38 : vector<1x128xf32> to vector<8x128xf32>
    %40 = arith.addf %37, %39 : vector<8x128xf32>
    %cst_31 = arith.constant 0.000000e+00 : f32
    %41 = vector.broadcast %cst_31 : f32 to vector<8x128xf32>
    %42 = arith.cmpf ogt, %40, %41 : vector<8x128xf32>
    %cst_32 = arith.constant 0.00999999977 : f32
    %43 = vector.broadcast %cst_32 : f32 to vector<8x128xf32>
    %44 = arith.mulf %43, %40 : vector<8x128xf32>
    %45 = arith.select %42, %40, %44 : vector<8x128xi1>, vector<8x128xf32>
    %c0_33 = arith.constant 0 : index
    %c0_34 = arith.constant 0 : index
    %46 = vector.load %arg12[%c0_33, %c0_34] : memref<128x128xf32, #tpu.memory_space<vmem>>, vector<128x128xf32>
    %cst_35 = arith.constant dense<0.000000e+00> : vector<8x128xf32>
    %47 = tpu.matmul %45, %46, %cst_35 {dimension_numbers = #tpu.dot_dimension_numbers<[1], [0], [0], [1], [0, 0, 1, 1], [], []>} : vector<8x128xf32>, vector<128x128xf32>, vector<8x128xf32> -> vector<8x128xf32>
    %c0_36 = arith.constant 0 : index
    %c0_37 = arith.constant 0 : index
    %48 = vector.load %arg13[%c0_36, %c0_37] : memref<1x128xf32, #tpu.memory_space<vmem>>, vector<1x128xf32>
    %49 = vector.broadcast %48 : vector<1x128xf32> to vector<8x128xf32>
    %50 = arith.addf %47, %49 : vector<8x128xf32>
    %cst_38 = arith.constant 0.000000e+00 : f32
    %51 = vector.broadcast %cst_38 : f32 to vector<8x128xf32>
    %52 = arith.cmpf ogt, %50, %51 : vector<8x128xf32>
    %cst_39 = arith.constant 0.00999999977 : f32
    %53 = vector.broadcast %cst_39 : f32 to vector<8x128xf32>
    %54 = arith.mulf %53, %50 : vector<8x128xf32>
    %55 = arith.select %52, %50, %54 : vector<8x128xi1>, vector<8x128xf32>
    %c0_40 = arith.constant 0 : index
    %c0_41 = arith.constant 0 : index
    %56 = vector.load %arg14[%c0_40, %c0_41] : memref<128x256xf32, #tpu.memory_space<vmem>>, vector<128x256xf32>
    %cst_42 = arith.constant dense<0.000000e+00> : vector<8x256xf32>
    %57 = tpu.matmul %55, %56, %cst_42 {dimension_numbers = #tpu.dot_dimension_numbers<[1], [0], [0], [1], [0, 0, 1, 1], [], []>} : vector<8x128xf32>, vector<128x256xf32>, vector<8x256xf32> -> vector<8x256xf32>
    %c0_43 = arith.constant 0 : index
    %c0_44 = arith.constant 0 : index
    %58 = vector.load %arg15[%c0_43, %c0_44] : memref<1x256xf32, #tpu.memory_space<vmem>>, vector<1x256xf32>
    %59 = vector.broadcast %58 : vector<1x256xf32> to vector<8x256xf32>
    %60 = arith.addf %57, %59 : vector<8x256xf32>
    %cst_45 = arith.constant 0.000000e+00 : f32
    %61 = vector.broadcast %cst_45 : f32 to vector<8x256xf32>
    %62 = arith.cmpf ogt, %60, %61 : vector<8x256xf32>
    %cst_46 = arith.constant 0.00999999977 : f32
    %63 = vector.broadcast %cst_46 : f32 to vector<8x256xf32>
    %64 = arith.mulf %63, %60 : vector<8x256xf32>
    %65 = arith.select %62, %60, %64 : vector<8x256xi1>, vector<8x256xf32>
    %c0_47 = arith.constant 0 : index
    %c0_48 = arith.constant 0 : index
    %66 = vector.load %arg16[%c0_47, %c0_48] : memref<256x128xf32, #tpu.memory_space<vmem>>, vector<256x128xf32>
    %cst_49 = arith.constant dense<0.000000e+00> : vector<8x128xf32>
    %67 = tpu.matmul %65, %66, %cst_49 {dimension_numbers = #tpu.dot_dimension_numbers<[1], [0], [0], [1], [0, 0, 1, 1], [], []>} : vector<8x256xf32>, vector<256x128xf32>, vector<8x128xf32> -> vector<8x128xf32>
    %c0_50 = arith.constant 0 : index
    %c0_51 = arith.constant 0 : index
    %68 = vector.load %arg17[%c0_50, %c0_51] : memref<1x128xf32, #tpu.memory_space<vmem>>, vector<1x128xf32>
    %69 = vector.broadcast %68 : vector<1x128xf32> to vector<8x128xf32>
    %70 = arith.addf %67, %69 : vector<8x128xf32>
    %c0_52 = arith.constant 0 : index
    %c0_53 = arith.constant 0 : index
    %71 = vector.load %arg18[%c0_52, %c0_53] : memref<8x128xf32, #tpu.memory_space<vmem>>, vector<8x128xf32>
    tpu.vector_store %arg18[%c0_52, %c0_53], %70 {strides = array<i32>} : memref<8x128xf32, #tpu.memory_space<vmem>>, vector<8x128xf32>,
    return
  }
  func.func @transform_0(%arg0: i32) -> (i32, i32) {
    %c0_i32 = arith.constant 0 : i32
    %c0_i32_0 = arith.constant 0 : i32
    return %arg0, %c0_i32 : i32, i32
  }
  func.func @transform_1(%arg0: i32) -> (i32, i32) {
    %c0_i32 = arith.constant 0 : i32
    %c0_i32_0 = arith.constant 0 : i32
    %c0_i32_1 = arith.constant 0 : i32
    return %c0_i32, %c0_i32_0 : i32, i32
  }
  func.func @transform_2(%arg0: i32) -> (i32, i32) {
    %c0_i32 = arith.constant 0 : i32
    %c0_i32_0 = arith.constant 0 : i32
    %c0_i32_1 = arith.constant 0 : i32
    return %c0_i32, %c0_i32_0 : i32, i32
  }
  func.func @transform_3(%arg0: i32) -> (i32, i32) {
    %c0_i32 = arith.constant 0 : i32
    %c0_i32_0 = arith.constant 0 : i32
    %c0_i32_1 = arith.constant 0 : i32
    return %c0_i32, %c0_i32_0 : i32, i32
  }
  func.func @transform_4(%arg0: i32) -> (i32, i32) {
    %c0_i32 = arith.constant 0 : i32
    %c0_i32_0 = arith.constant 0 : i32
    %c0_i32_1 = arith.constant 0 : i32
    return %c0_i32, %c0_i32_0 : i32, i32
  }
  func.func @transform_5(%arg0: i32) -> (i32, i32) {
    %c0_i32 = arith.constant 0 : i32
    %c0_i32_0 = arith.constant 0 : i32
    %c0_i32_1 = arith.constant 0 : i32
    return %c0_i32, %c0_i32_0 : i32, i32
  }
  func.func @transform_6(%arg0: i32) -> (i32, i32) {
    %c0_i32 = arith.constant 0 : i32
    %c0_i32_0 = arith.constant 0 : i32
    %c0_i32_1 = arith.constant 0 : i32
    return %c0_i32, %c0_i32_0 : i32, i32
  }
  func.func @transform_7(%arg0: i32) -> (i32, i32) {
    %c0_i32 = arith.constant 0 : i32
    %c0_i32_0 = arith.constant 0 : i32
    %c0_i32_1 = arith.constant 0 : i32
    return %c0_i32, %c0_i32_0 : i32, i32
  }
  func.func @transform_8(%arg0: i32) -> (i32, i32) {
    %c0_i32 = arith.constant 0 : i32
    %c0_i32_0 = arith.constant 0 : i32
    %c0_i32_1 = arith.constant 0 : i32
    return %c0_i32, %c0_i32_0 : i32, i32
  }
  func.func @transform_9(%arg0: i32) -> (i32, i32) {
    %c0_i32 = arith.constant 0 : i32
    %c0_i32_0 = arith.constant 0 : i32
    %c0_i32_1 = arith.constant 0 : i32
    return %c0_i32, %c0_i32_0 : i32, i32
  }
  func.func @transform_10(%arg0: i32) -> (i32, i32) {
    %c0_i32 = arith.constant 0 : i32
    %c0_i32_0 = arith.constant 0 : i32
    %c0_i32_1 = arith.constant 0 : i32
    return %c0_i32, %c0_i32_0 : i32, i32
  }
  func.func @transform_11(%arg0: i32) -> (i32, i32) {
    %c0_i32 = arith.constant 0 : i32
    %c0_i32_0 = arith.constant 0 : i32
    %c0_i32_1 = arith.constant 0 : i32
    return %c0_i32, %c0_i32_0 : i32, i32
  }
  func.func @transform_12(%arg0: i32) -> (i32, i32) {
    %c0_i32 = arith.constant 0 : i32
    %c0_i32_0 = arith.constant 0 : i32
    %c0_i32_1 = arith.constant 0 : i32
    return %c0_i32, %c0_i32_0 : i32, i32
  }
  func.func @transform_13(%arg0: i32) -> (i32, i32) {
    %c0_i32 = arith.constant 0 : i32
    %c0_i32_0 = arith.constant 0 : i32
    %c0_i32_1 = arith.constant 0 : i32
    return %c0_i32, %c0_i32_0 : i32, i32
  }
  func.func @transform_14(%arg0: i32) -> (i32, i32) {
    %c0_i32 = arith.constant 0 : i32
    %c0_i32_0 = arith.constant 0 : i32
    %c0_i32_1 = arith.constant 0 : i32
    return %c0_i32, %c0_i32_0 : i32, i32
  }
  func.func @transform_15(%arg0: i32) -> (i32, i32) {
    %c0_i32 = arith.constant 0 : i32
    %c0_i32_0 = arith.constant 0 : i32
    %c0_i32_1 = arith.constant 0 : i32
    return %c0_i32, %c0_i32_0 : i32, i32
  }
  func.func @transform_16(%arg0: i32) -> (i32, i32) {
    %c0_i32 = arith.constant 0 : i32
    %c0_i32_0 = arith.constant 0 : i32
    %c0_i32_1 = arith.constant 0 : i32
    return %c0_i32, %c0_i32_0 : i32, i32
  }
  func.func @transform_17(%arg0: i32) -> (i32, i32) {
    %c0_i32 = arith.constant 0 : i32
    %c0_i32_0 = arith.constant 0 : i32
    return %arg0, %c0_i32 : i32, i32
  }
}

module attributes {stable_mosaic.version = 11 : i64} {
  func.func @_sae_kernel(%arg0: i32, %arg1: memref<8x128xf32, #tpu.memory_space<vmem>>, %arg2: memref<128x256xf32, #tpu.memory_space<vmem>>, %arg3: memref<1x256xf32, #tpu.memory_space<vmem>>, %arg4: memref<256x128xf32, #tpu.memory_space<vmem>>, %arg5: memref<1x128xf32, #tpu.memory_space<vmem>>, %arg6: memref<128x128xf32, #tpu.memory_space<vmem>>, %arg7: memref<1x128xf32, #tpu.memory_space<vmem>>, %arg8: memref<128x128xf32, #tpu.memory_space<vmem>>, %arg9: memref<1x128xf32, #tpu.memory_space<vmem>>, %arg10: memref<128x128xf32, #tpu.memory_space<vmem>>, %arg11: memref<1x128xf32, #tpu.memory_space<vmem>>, %arg12: memref<128x128xf32, #tpu.memory_space<vmem>>, %arg13: memref<1x128xf32, #tpu.memory_space<vmem>>, %arg14: memref<128x256xf32, #tpu.memory_space<vmem>>, %arg15: memref<1x256xf32, #tpu.memory_space<vmem>>, %arg16: memref<256x128xf32, #tpu.memory_space<vmem>>, %arg17: memref<1x128xf32, #tpu.memory_space<vmem>>, %arg18: memref<8x128xf32, #tpu.memory_space<vmem>>) attributes {dimension_semantics = [#tpu.dimension_semantics<parallel>], iteration_bounds = array<i64: 1>, scalar_prefetch = 0 : i64, scratch_operands = 0 : i64, tpu.core_type = #tpu.core_type<tc>, window_params = [{transform_indices = @transform_0, window_bounds = array<i64: 8, 128>}, {pipeline_mode = #tpu.pipeline_mode<synchronous>, transform_indices = @transform_1, window_bounds = array<i64: 128, 256>}, {pipeline_mode = #tpu.pipeline_mode<synchronous>, transform_indices = @transform_2, window_bounds = array<i64: 1, 256>}, {pipeline_mode = #tpu.pipeline_mode<synchronous>, transform_indices = @transform_3, window_bounds = array<i64: 256, 128>}, {pipeline_mode = #tpu.pipeline_mode<synchronous>, transform_indices = @transform_4, window_bounds = array<i64: 1, 128>}, {pipeline_mode = #tpu.pipeline_mode<synchronous>, transform_indices = @transform_5, window_bounds = array<i64: 128, 128>}, {pipeline_mode = #tpu.pipeline_mode<synchronous>, transform_indices = @transform_6, window_bounds = array<i64: 1, 128>}, {pipeline_mode = #tpu.pipeline_mode<synchronous>, transform_indices = @transform_7, window_bounds = array<i64: 128, 128>}, {pipeline_mode = #tpu.pipeline_mode<synchronous>, transform_indices = @transform_8, window_bounds = array<i64: 1, 128>}, {pipeline_mode = #tpu.pipeline_mode<synchronous>, transform_indices = @transform_9, window_bounds = array<i64: 128, 128>}, {pipeline_mode = #tpu.pipeline_mode<synchronous>, transform_indices = @transform_10, window_bounds = array<i64: 1, 128>}, {pipeline_mode = #tpu.pipeline_mode<synchronous>, transform_indices = @transform_11, window_bounds = array<i64: 128, 128>}, {pipeline_mode = #tpu.pipeline_mode<synchronous>, transform_indices = @transform_12, window_bounds = array<i64: 1, 128>}, {pipeline_mode = #tpu.pipeline_mode<synchronous>, transform_indices = @transform_13, window_bounds = array<i64: 128, 256>}, {pipeline_mode = #tpu.pipeline_mode<synchronous>, transform_indices = @transform_14, window_bounds = array<i64: 1, 256>}, {pipeline_mode = #tpu.pipeline_mode<synchronous>, transform_indices = @transform_15, window_bounds = array<i64: 256, 128>}, {pipeline_mode = #tpu.pipeline_mode<synchronous>, transform_indices = @transform_16, window_bounds = array<i64: 1, 128>}, {transform_indices = @transform_17, window_bounds = array<i64: 8, 128>}]} {
    %c0 = arith.constant 0 : index
    %c0_0 = arith.constant 0 : index
    %0 = vector.load %arg1[%c0, %c0_0] : memref<8x128xf32, #tpu.memory_space<vmem>>, vector<8x128xf32>
    %c0_1 = arith.constant 0 : index
    %c0_2 = arith.constant 0 : index
    %1 = vector.load %arg2[%c0_1, %c0_2] : memref<128x256xf32, #tpu.memory_space<vmem>>, vector<128x256xf32>
    %cst = arith.constant dense<0.000000e+00> : vector<8x256xf32>
    %2 = tpu.matmul %0, %1, %cst {dimension_numbers = #tpu.dot_dimension_numbers<[1], [0], [0], [1], [0, 0, 1, 1], [], []>} : vector<8x128xf32>, vector<128x256xf32>, vector<8x256xf32> -> vector<8x256xf32>
    %c0_3 = arith.constant 0 : index
    %c0_4 = arith.constant 0 : index
    %3 = vector.load %arg3[%c0_3, %c0_4] : memref<1x256xf32, #tpu.memory_space<vmem>>, vector<1x256xf32>
    %4 = vector.broadcast %3 : vector<1x256xf32> to vector<8x256xf32>
    %5 = arith.addf %2, %4 : vector<8x256xf32>
    %cst_5 = arith.constant 0.000000e+00 : f32
    %6 = vector.broadcast %cst_5 : f32 to vector<8x256xf32>
    %7 = arith.cmpf ogt, %5, %6 : vector<8x256xf32>
    %cst_6 = arith.constant 0.00999999977 : f32
    %8 = vector.broadcast %cst_6 : f32 to vector<8x256xf32>
    %9 = arith.mulf %8, %5 : vector<8x256xf32>
    %10 = arith.select %7, %5, %9 : vector<8x256xi1>, vector<8x256xf32>
    %c0_7 = arith.constant 0 : index
    %c0_8 = arith.constant 0 : index
    %11 = vector.load %arg4[%c0_7, %c0_8] : memref<256x128xf32, #tpu.memory_space<vmem>>, vector<256x128xf32>
    %cst_9 = arith.constant dense<0.000000e+00> : vector<8x128xf32>
    %12 = tpu.matmul %10, %11, %cst_9 {dimension_numbers = #tpu.dot_dimension_numbers<[1], [0], [0], [1], [0, 0, 1, 1], [], []>} : vector<8x256xf32>, vector<256x128xf32>, vector<8x128xf32> -> vector<8x128xf32>
    %c0_10 = arith.constant 0 : index
    %c0_11 = arith.constant 0 : index
    %13 = vector.load %arg5[%c0_10, %c0_11] : memref<1x128xf32, #tpu.memory_space<vmem>>, vector<1x128xf32>
    %14 = vector.broadcast %13 : vector<1x128xf32> to vector<8x128xf32>
    %15 = arith.addf %12, %14 : vector<8x128xf32>
    %cst_12 = arith.constant 0.000000e+00 : f32
    %16 = vector.broadcast %cst_12 : f32 to vector<8x128xf32>
    %17 = arith.cmpf ogt, %15, %16 : vector<8x128xf32>
    %cst_13 = arith.constant 0.00999999977 : f32
    %18 = vector.broadcast %cst_13 : f32 to vector<8x128xf32>
    %19 = arith.mulf %18, %15 : vector<8x128xf32>
    %20 = arith.select %17, %15, %19 : vector<8x128xi1>, vector<8x128xf32>
    %c0_14 = arith.constant 0 : index
    %c0_15 = arith.constant 0 : index
    %21 = vector.load %arg6[%c0_14, %c0_15] : memref<128x128xf32, #tpu.memory_space<vmem>>, vector<128x128xf32>
    %cst_16 = arith.constant dense<0.000000e+00> : vector<8x128xf32>
    %22 = tpu.matmul %20, %21, %cst_16 {dimension_numbers = #tpu.dot_dimension_numbers<[1], [0], [0], [1], [0, 0, 1, 1], [], []>} : vector<8x128xf32>, vector<128x128xf32>, vector<8x128xf32> -> vector<8x128xf32>
    %c0_17 = arith.constant 0 : index
    %c0_18 = arith.constant 0 : index
    %23 = vector.load %arg7[%c0_17, %c0_18] : memref<1x128xf32, #tpu.memory_space<vmem>>, vector<1x128xf32>
    %24 = vector.broadcast %23 : vector<1x128xf32> to vector<8x128xf32>
    %25 = arith.addf %22, %24 : vector<8x128xf32>
    %cst_19 = arith.constant 0.000000e+00 : f32
    %26 = vector.broadcast %cst_19 : f32 to vector<8x128xf32>
    %27 = arith.cmpf ogt, %25, %26 : vector<8x128xf32>
    %cst_20 = arith.constant 0.00999999977 : f32
    %28 = vector.broadcast %cst_20 : f32 to vector<8x128xf32>
    %29 = arith.mulf %28, %25 : vector<8x128xf32>
    %30 = arith.select %27, %25, %29 : vector<8x128xi1>, vector<8x128xf32>
    %c0_21 = arith.constant 0 : index
    %c0_22 = arith.constant 0 : index
    %31 = vector.load %arg8[%c0_21, %c0_22] : memref<128x128xf32, #tpu.memory_space<vmem>>, vector<128x128xf32>
    %cst_23 = arith.constant dense<0.000000e+00> : vector<8x128xf32>
    %32 = tpu.matmul %30, %31, %cst_23 {dimension_numbers = #tpu.dot_dimension_numbers<[1], [0], [0], [1], [0, 0, 1, 1], [], []>} : vector<8x128xf32>, vector<128x128xf32>, vector<8x128xf32> -> vector<8x128xf32>
    %c0_24 = arith.constant 0 : index
    %c0_25 = arith.constant 0 : index
    %33 = vector.load %arg9[%c0_24, %c0_25] : memref<1x128xf32, #tpu.memory_space<vmem>>, vector<1x128xf32>
    %34 = vector.broadcast %33 : vector<1x128xf32> to vector<8x128xf32>
    %35 = arith.addf %32, %34 : vector<8x128xf32>
    %c0_26 = arith.constant 0 : index
    %c0_27 = arith.constant 0 : index
    %36 = vector.load %arg10[%c0_26, %c0_27] : memref<128x128xf32, #tpu.memory_space<vmem>>, vector<128x128xf32>
    %cst_28 = arith.constant dense<0.000000e+00> : vector<8x128xf32>
    %37 = tpu.matmul %35, %36, %cst_28 {dimension_numbers = #tpu.dot_dimension_numbers<[1], [0], [0], [1], [0, 0, 1, 1], [], []>} : vector<8x128xf32>, vector<128x128xf32>, vector<8x128xf32> -> vector<8x128xf32>
    %c0_29 = arith.constant 0 : index
    %c0_30 = arith.constant 0 : index
    %38 = vector.load %arg11[%c0_29, %c0_30] : memref<1x128xf32, #tpu.memory_space<vmem>>, vector<1x128xf32>
    %39 = vector.broadcast %38 : vector<1x128xf32> to vector<8x128xf32>
    %40 = arith.addf %37, %39 : vector<8x128xf32>
    %cst_31 = arith.constant 0.000000e+00 : f32
    %41 = vector.broadcast %cst_31 : f32 to vector<8x128xf32>
    %42 = arith.cmpf ogt, %40, %41 : vector<8x128xf32>
    %cst_32 = arith.constant 0.00999999977 : f32
    %43 = vector.broadcast %cst_32 : f32 to vector<8x128xf32>
    %44 = arith.mulf %43, %40 : vector<8x128xf32>
    %45 = arith.select %42, %40, %44 : vector<8x128xi1>, vector<8x128xf32>
    %c0_33 = arith.constant 0 : index
    %c0_34 = arith.constant 0 : index
    %46 = vector.load %arg12[%c0_33, %c0_34] : memref<128x128xf32, #tpu.memory_space<vmem>>, vector<128x128xf32>
    %cst_35 = arith.constant dense<0.000000e+00> : vector<8x128xf32>
    %47 = tpu.matmul %45, %46, %cst_35 {dimension_numbers = #tpu.dot_dimension_numbers<[1], [0], [0], [1], [0, 0, 1, 1], [], []>} : vector<8x128xf32>, vector<128x128xf32>, vector<8x128xf32> -> vector<8x128xf32>
    %c0_36 = arith.constant 0 : index
    %c0_37 = arith.constant 0 : index
    %48 = vector.load %arg13[%c0_36, %c0_37] : memref<1x128xf32, #tpu.memory_space<vmem>>, vector<1x128xf32>
    %49 = vector.broadcast %48 : vector<1x128xf32> to vector<8x128xf32>
    %50 = arith.addf %47, %49 : vector<8x128xf32>
    %cst_38 = arith.constant 0.000000e+00 : f32
    %51 = vector.broadcast %cst_38 : f32 to vector<8x128xf32>
    %52 = arith.cmpf ogt, %50, %51 : vector<8x128xf32>
    %cst_39 = arith.constant 0.00999999977 : f32
    %53 = vector.broadcast %cst_39 : f32 to vector<8x128xf32>
    %54 = arith.mulf %53, %50 : vector<8x128xf32>
    %55 = arith.select %52, %50, %54 : vector<8x128xi1>, vector<8x128xf32>
    %c0_40 = arith.constant 0 : index
    %c0_41 = arith.constant 0 : index
    %56 = vector.load %arg14[%c0_40, %c0_41] : memref<128x256xf32, #tpu.memory_space<vmem>>, vector<128x256xf32>
    %cst_42 = arith.constant dense<0.000000e+00> : vector<8x256xf32>
    %57 = tpu.matmul %55, %56, %cst_42 {dimension_numbers = #tpu.dot_dimension_numbers<[1], [0], [0], [1], [0, 0, 1, 1], [], []>} : vector<8x128xf32>, vector<128x256xf32>, vector<8x256xf32> -> vector<8x256xf32>
    %c0_43 = arith.constant 0 : index
    %c0_44 = arith.constant 0 : index
    %58 = vector.load %arg15[%c0_43, %c0_44] : memref<1x256xf32, #tpu.memory_space<vmem>>, vector<1x256xf32>
    %59 = vector.broadcast %58 : vector<1x256xf32> to vector<8x256xf32>
    %60 = arith.addf %57, %59 : vector<8x256xf32>
    %cst_45 = arith.constant 0.000000e+00 : f32
    %61 = vector.broadcast %cst_45 : f32 to vector<8x256xf32>
    %62 = arith.cmpf ogt, %60, %61 : vector<8x256xf32>
    %cst_46 = arith.constant 0.00999999977 : f32
    %63 = vector.broadcast %cst_46 : f32 to vector<8x256xf32>
    %64 = arith.mulf %63, %60 : vector<8x256xf32>
    %65 = arith.select %62, %60, %64 : vector<8x256xi1>, vector<8x256xf32>
    %c0_47 = arith.constant 0 : index
    %c0_48 = arith.constant 0 : index
    %66 = vector.load %arg16[%c0_47, %c0_48] : memref<256x128xf32, #tpu.memory_space<vmem>>, vector<256x128xf32>
    %cst_49 = arith.constant dense<0.000000e+00> : vector<8x128xf32>
    %67 = tpu.matmul %65, %66, %cst_49 {dimension_numbers = #tpu.dot_dimension_numbers<[1], [0], [0], [1], [0, 0, 1, 1], [], []>} : vector<8x256xf32>, vector<256x128xf32>, vector<8x128xf32> -> vector<8x128xf32>
    %c0_50 = arith.constant 0 : index
    %c0_51 = arith.constant 0 : index
    %68 = vector.load %arg17[%c0_50, %c0_51] : memref<1x128xf32, #tpu.memory_space<vmem>>, vector<1x128xf32>
    %69 = vector.broadcast %68 : vector<1x128xf32> to vector<8x128xf32>
    %70 = arith.addf %67, %69 : vector<8x128xf32>
    %c0_52 = arith.constant 0 : index
    %c0_53 = arith.constant 0 : index
    %71 = vector.load %arg18[%c0_52, %c0_53] : memref<8x128xf32, #tpu.memory_space<vmem>>, vector<8x128xf32>
    tpu.vector_store %arg18[%c0_52, %c0_53], %70 {strides = array<i32>} : memref<8x128xf32, #tpu.memory_space<vmem>>, vector<8x128xf32>,
    return
  }
  func.func @transform_0(%arg0: i32) -> (i32, i32) {
    %c0_i32 = arith.constant 0 : i32
    %c0_i32_0 = arith.constant 0 : i32
    return %arg0, %c0_i32 : i32, i32
  }
  func.func @transform_1(%arg0: i32) -> (i32, i32) {
    %c0_i32 = arith.constant 0 : i32
    %c0_i32_0 = arith.constant 0 : i32
    %c0_i32_1 = arith.constant 0 : i32
    return %c0_i32, %c0_i32_0 : i32, i32
  }
  func.func @transform_2(%arg0: i32) -> (i32, i32) {
    %c0_i32 = arith.constant 0 : i32
    %c0_i32_0 = arith.constant 0 : i32
    %c0_i32_1 = arith.constant 0 : i32
    return %c0_i32, %c0_i32_0 : i32, i32
  }
  func.func @transform_3(%arg0: i32) -> (i32, i32) {
    %c0_i32 = arith.constant 0 : i32
    %c0_i32_0 = arith.constant 0 : i32
    %c0_i32_1 = arith.constant 0 : i32
    return %c0_i32, %c0_i32_0 : i32, i32
  }
  func.func @transform_4(%arg0: i32) -> (i32, i32) {
    %c0_i32 = arith.constant 0 : i32
    %c0_i32_0 = arith.constant 0 : i32
    %c0_i32_1 = arith.constant 0 : i32
    return %c0_i32, %c0_i32_0 : i32, i32
  }
  func.func @transform_5(%arg0: i32) -> (i32, i32) {
    %c0_i32 = arith.constant 0 : i32
    %c0_i32_0 = arith.constant 0 : i32
    %c0_i32_1 = arith.constant 0 : i32
    return %c0_i32, %c0_i32_0 : i32, i32
  }
  func.func @transform_6(%arg0: i32) -> (i32, i32) {
    %c0_i32 = arith.constant 0 : i32
    %c0_i32_0 = arith.constant 0 : i32
    %c0_i32_1 = arith.constant 0 : i32
    return %c0_i32, %c0_i32_0 : i32, i32
  }
  func.func @transform_7(%arg0: i32) -> (i32, i32) {
    %c0_i32 = arith.constant 0 : i32
    %c0_i32_0 = arith.constant 0 : i32
    %c0_i32_1 = arith.constant 0 : i32
    return %c0_i32, %c0_i32_0 : i32, i32
  }
  func.func @transform_8(%arg0: i32) -> (i32, i32) {
    %c0_i32 = arith.constant 0 : i32
    %c0_i32_0 = arith.constant 0 : i32
    %c0_i32_1 = arith.constant 0 : i32
    return %c0_i32, %c0_i32_0 : i32, i32
  }
  func.func @transform_9(%arg0: i32) -> (i32, i32) {
    %c0_i32 = arith.constant 0 : i32
    %c0_i32_0 = arith.constant 0 : i32
    %c0_i32_1 = arith.constant 0 : i32
    return %c0_i32, %c0_i32_0 : i32, i32
  }
  func.func @transform_10(%arg0: i32) -> (i32, i32) {
    %c0_i32 = arith.constant 0 : i32
    %c0_i32_0 = arith.constant 0 : i32
    %c0_i32_1 = arith.constant 0 : i32
    return %c0_i32, %c0_i32_0 : i32, i32
  }
  func.func @transform_11(%arg0: i32) -> (i32, i32) {
    %c0_i32 = arith.constant 0 : i32
    %c0_i32_0 = arith.constant 0 : i32
    %c0_i32_1 = arith.constant 0 : i32
    return %c0_i32, %c0_i32_0 : i32, i32
  }
  func.func @transform_12(%arg0: i32) -> (i32, i32) {
    %c0_i32 = arith.constant 0 : i32
    %c0_i32_0 = arith.constant 0 : i32
    %c0_i32_1 = arith.constant 0 : i32
    return %c0_i32, %c0_i32_0 : i32, i32
  }
  func.func @transform_13(%arg0: i32) -> (i32, i32) {
    %c0_i32 = arith.constant 0 : i32
    %c0_i32_0 = arith.constant 0 : i32
    %c0_i32_1 = arith.constant 0 : i32
    return %c0_i32, %c0_i32_0 : i32, i32
  }
  func.func @transform_14(%arg0: i32) -> (i32, i32) {
    %c0_i32 = arith.constant 0 : i32
    %c0_i32_0 = arith.constant 0 : i32
    %c0_i32_1 = arith.constant 0 : i32
    return %c0_i32, %c0_i32_0 : i32, i32
  }
  func.func @transform_15(%arg0: i32) -> (i32, i32) {
    %c0_i32 = arith.constant 0 : i32
    %c0_i32_0 = arith.constant 0 : i32
    %c0_i32_1 = arith.constant 0 : i32
    return %c0_i32, %c0_i32_0 : i32, i32
  }
  func.func @transform_16(%arg0: i32) -> (i32, i32) {
    %c0_i32 = arith.constant 0 : i32
    %c0_i32_0 = arith.constant 0 : i32
    %c0_i32_1 = arith.constant 0 : i32
    return %c0_i32, %c0_i32_0 : i32, i32
  }
  func.func @transform_17(%arg0: i32) -> (i32, i32) {
    %c0_i32 = arith.constant 0 : i32
    %c0_i32_0 = arith.constant 0 : i32
    return %arg0, %c0_i32 : i32, i32
  }
}

</mosaic_0001>

<llo_original>
// kernel: tpu_custom_call.1
$region0: #{tpu_custom_call.1}
  #allocation0 [shape = 'u32[]', space=smem, size = 0x4, offset = 0x4, fixed_abs, tag = 'smem constant byte address 0x4 - core index']
  #allocation1 [shape = 'u32[144,128]{1,0:T(1,128)}', space=vmem, size = 0x12000, scoped, tag = 'internal scratch']
  %s0 = inlined_call_operand.hbm [shape: f32[8,128], index: 0, kind: input, shape index: {}]
  %s1 = inlined_call_operand.hbm [shape: f32[128,256], index: 1, kind: input, shape index: {}]
  %s2 = inlined_call_operand.vmem [shape: f32[1,256], index: 2, kind: input, shape index: {}]
  %s3 = inlined_call_operand.hbm [shape: f32[256,128], index: 3, kind: input, shape index: {}]
  %s4 = inlined_call_operand.vmem [shape: f32[1,128], index: 4, kind: input, shape index: {}]
  %s5 = inlined_call_operand.hbm [shape: f32[128,128], index: 5, kind: input, shape index: {}]
  %s6 = inlined_call_operand.vmem [shape: f32[1,128], index: 6, kind: input, shape index: {}]
  %s7 = inlined_call_operand.hbm [shape: f32[128,128], index: 7, kind: input, shape index: {}]
  %s8 = inlined_call_operand.vmem [shape: f32[1,128], index: 8, kind: input, shape index: {}]
  %s9 = inlined_call_operand.hbm [shape: f32[128,128], index: 9, kind: input, shape index: {}]
  %s10 = inlined_call_operand.vmem [shape: f32[1,128], index: 10, kind: input, shape index: {}]
  %s11 = inlined_call_operand.hbm [shape: f32[128,128], index: 11, kind: input, shape index: {}]
  %s12 = inlined_call_operand.vmem [shape: f32[1,128], index: 12, kind: input, shape index: {}]
  %s13 = inlined_call_operand.hbm [shape: f32[128,256], index: 13, kind: input, shape index: {}]
  %s14 = inlined_call_operand.vmem [shape: f32[1,256], index: 14, kind: input, shape index: {}]
  %s15 = inlined_call_operand.hbm [shape: f32[256,128], index: 15, kind: input, shape index: {}]
  %s16 = inlined_call_operand.vmem [shape: f32[1,128], index: 16, kind: input, shape index: {}]
  %s17 = inlined_call_operand.hbm [shape: f32[8,128], index: 17, kind: output, shape index: {}]
  %s18 = sld [smem:[#allocation0]]
  $region114: #{tpu_custom_call.1} parent=0
    _
  %s20 = ssub.s32 1, %s18
  %s21 = scalar_select 0, %s20, %s18
  $region1: #{tpu_custom_call.1} parent=0
    #allocation2 [shape = 'u8[4096]{0}', space=vmem, size = 0x1000, scoped, tag = 'input window, operand 0, single buffered']
    #allocation3 [shape = 's32[1]{0}', space=sflag, size = 0x4, scoped, tag = 'scoped memory for tpu_custom_call.1']
    #allocation4 [shape = 's32[1]{0}', space=sflag, size = 0x4, scoped, tag = 'scoped memory for tpu_custom_call.1']
    #allocation5 [shape = 'u8[131072]{0}', space=vmem, size = 0x20000, scoped, tag = 'input window, operand 1, single buffered']
    #allocation6 [shape = 's32[1]{0}', space=sflag, size = 0x4, scoped, tag = 'scoped memory for tpu_custom_call.1']
    #allocation7 [shape = 'u8[131072]{0}', space=vmem, size = 0x20000, scoped, tag = 'input window, operand 3, single buffered']
    #allocation8 [shape = 'u8[65536]{0}', space=vmem, size = 0x10000, scoped, tag = 'input window, operand 5, single buffered']
    #allocation9 [shape = 's32[1]{0}', space=sflag, size = 0x4, scoped, tag = 'scoped memory for tpu_custom_call.1']
    #allocation10 [shape = 'u8[65536]{0}', space=vmem, size = 0x10000, scoped, tag = 'input window, operand 7, single buffered']
    #allocation11 [shape = 'u8[65536]{0}', space=vmem, size = 0x10000, scoped, tag = 'input window, operand 9, single buffered']
    #allocation12 [shape = 's32[1]{0}', space=sflag, size = 0x4, scoped, tag = 'scoped memory for tpu_custom_call.1']
    #allocation13 [shape = 'u8[65536]{0}', space=vmem, size = 0x10000, scoped, tag = 'input window, operand 11, single buffered']
    #allocation14 [shape = 'u8[131072]{0}', space=vmem, size = 0x20000, scoped, tag = 'input window, operand 13, single buffered']
    #allocation15 [shape = 's32[1]{0}', space=sflag, size = 0x4, scoped, tag = 'scoped memory for tpu_custom_call.1']
    #allocation16 [shape = 'u8[131072]{0}', space=vmem, size = 0x20000, scoped, tag = 'input window, operand 15, single buffered']
    #allocation17 [shape = 'u8[4096]{0}', space=vmem, size = 0x1000, scoped, tag = 'output window, operand 0, single buffered']
    %22 = vsyncpa [#allocation3], 0
    %23 = vsyncpa [#allocation6], 0
    %24 = vsyncpa [#allocation9], 0
    %25 = vsyncpa [#allocation12], 0
    %26 = vsyncpa [#allocation15], 0
    %27 = vsyncpa [#allocation4], 0
    // Predicated region
    $region2: #{tpu_custom_call.1} parent=1 // pred_check
      _
    $region3: #{tpu_custom_call.1} parent=1 // pred_check_branch
      %29 = sbr.rel (0) target = $region5
    $region4: #{tpu_custom_call.1} parent=1 // pred_region
      %s31 = ssub.s32 128, 128
      %32 = vsyncadd [#allocation3], %s31
      %s34 = sshll.u32 [#allocation2], 4
      %s35 = int_to_ptr.vmem [resolvable:$true] %s34
      %37 = dma.hbm_to_vmem [thread:$0]  %s0, 128, %s35, [#allocation3]
    $region5: #{tpu_custom_call.1} parent=1 // pred_fallthru
      _
    // Predicated region
    $region6: #{tpu_custom_call.1} parent=1 // pred_check
      _
    $region7: #{tpu_custom_call.1} parent=1 // pred_check_branch
      %39 = sbr.rel (0) target = $region9
    $region8: #{tpu_custom_call.1} parent=1 // pred_region
      %s41 = ssub.s32 4096, 4096
      %42 = vsyncadd [#allocation6], %s41
      %s43 = sshll.u32 [#allocation5], 4
      %s44 = int_to_ptr.vmem [resolvable:$true] %s43
      %49 = dma.hbm_to_vmem [thread:$0]  %s1, 4096, %s44, [#allocation6], 256, 256, 16
    $region9: #{tpu_custom_call.1} parent=1 // pred_fallthru
      _
    // Predicated region
    $region10: #{tpu_custom_call.1} parent=1 // pred_check
      _
    $region11: #{tpu_custom_call.1} parent=1 // pred_check_branch
      %51 = sbr.rel (0) target = $region13
    $region12: #{tpu_custom_call.1} parent=1 // pred_region
      _
    $region13: #{tpu_custom_call.1} parent=1 // pred_fallthru
      _
    // Predicated region
    $region14: #{tpu_custom_call.1} parent=1 // pred_check
      _
    $region15: #{tpu_custom_call.1} parent=1 // pred_check_branch
      %53 = sbr.rel (0) target = $region17
    $region16: #{tpu_custom_call.1} parent=1 // pred_region
      %s55 = ssub.s32 4096, 4096
      %56 = vsyncadd [#allocation6], %s55
      %s57 = sshll.u32 [#allocation7], 4
      %s58 = int_to_ptr.vmem [resolvable:$true] %s57
      %63 = dma.hbm_to_vmem [thread:$0]  %s3, 4096, %s58, [#allocation6], 128, 128, 8
    $region17: #{tpu_custom_call.1} parent=1 // pred_fallthru
      _
    // Predicated region
    $region18: #{tpu_custom_call.1} parent=1 // pred_check
      _
    $region19: #{tpu_custom_call.1} parent=1 // pred_check_branch
      %65 = sbr.rel (0) target = $region21
    $region20: #{tpu_custom_call.1} parent=1 // pred_region
      _
    $region21: #{tpu_custom_call.1} parent=1 // pred_fallthru
      _
    // Predicated region
    $region22: #{tpu_custom_call.1} parent=1 // pred_check
      _
    $region23: #{tpu_custom_call.1} parent=1 // pred_check_branch
      %67 = sbr.rel (0) target = $region25
    $region24: #{tpu_custom_call.1} parent=1 // pred_region
      %s69 = ssub.s32 2048, 2048
      %70 = vsyncadd [#allocation9], %s69
      %s71 = sshll.u32 [#allocation8], 4
      %s72 = int_to_ptr.vmem [resolvable:$true] %s71
      %77 = dma.hbm_to_vmem [thread:$0]  %s5, 2048, %s72, [#allocation9], 128, 128, 8
    $region25: #{tpu_custom_call.1} parent=1 // pred_fallthru
      _
    // Predicated region
    $region26: #{tpu_custom_call.1} parent=1 // pred_check
      _
    $region27: #{tpu_custom_call.1} parent=1 // pred_check_branch
      %79 = sbr.rel (0) target = $region29
    $region28: #{tpu_custom_call.1} parent=1 // pred_region
      _
    $region29: #{tpu_custom_call.1} parent=1 // pred_fallthru
      _
    // Predicated region
    $region30: #{tpu_custom_call.1} parent=1 // pred_check
      _
    $region31: #{tpu_custom_call.1} parent=1 // pred_check_branch
      %81 = sbr.rel (0) target = $region33
    $region32: #{tpu_custom_call.1} parent=1 // pred_region
      %s83 = ssub.s32 2048, 2048
      %84 = vsyncadd [#allocation9], %s83
      %s85 = sshll.u32 [#allocation10], 4
      %s86 = int_to_ptr.vmem [resolvable:$true] %s85
      %91 = dma.hbm_to_vmem [thread:$0]  %s7, 2048, %s86, [#allocation9], 128, 128, 8
    $region33: #{tpu_custom_call.1} parent=1 // pred_fallthru
      _
    // Predicated region
    $region34: #{tpu_custom_call.1} parent=1 // pred_check
      _
    $region35: #{tpu_custom_call.1} parent=1 // pred_check_branch
      %93 = sbr.rel (0) target = $region37
    $region36: #{tpu_custom_call.1} parent=1 // pred_region
      _
    $region37: #{tpu_custom_call.1} parent=1 // pred_fallthru
      _
    // Predicated region
    $region38: #{tpu_custom_call.1} parent=1 // pred_check
      _
    $region39: #{tpu_custom_call.1} parent=1 // pred_check_branch
      %95 = sbr.rel (0) target = $region41
    $region40: #{tpu_custom_call.1} parent=1 // pred_region
      %s97 = ssub.s32 2048, 2048
      %98 = vsyncadd [#allocation12], %s97
      %s99 = sshll.u32 [#allocation11], 4
      %s100 = int_to_ptr.vmem [resolvable:$true] %s99
      %105 = dma.hbm_to_vmem [thread:$0]  %s9, 2048, %s100, [#allocation12], 128, 128, 8
    $region41: #{tpu_custom_call.1} parent=1 // pred_fallthru
      _
    // Predicated region
    $region42: #{tpu_custom_call.1} parent=1 // pred_check
      _
    $region43: #{tpu_custom_call.1} parent=1 // pred_check_branch
      %107 = sbr.rel (0) target = $region45
    $region44: #{tpu_custom_call.1} parent=1 // pred_region
      _
    $region45: #{tpu_custom_call.1} parent=1 // pred_fallthru
      _
    // Predicated region
    $region46: #{tpu_custom_call.1} parent=1 // pred_check
      _
    $region47: #{tpu_custom_call.1} parent=1 // pred_check_branch
      %109 = sbr.rel (0) target = $region49
    $region48: #{tpu_custom_call.1} parent=1 // pred_region
      %s111 = ssub.s32 2048, 2048
      %112 = vsyncadd [#allocation12], %s111
      %s113 = sshll.u32 [#allocation13], 4
      %s114 = int_to_ptr.vmem [resolvable:$true] %s113
      %119 = dma.hbm_to_vmem [thread:$0]  %s11, 2048, %s114, [#allocation12], 128, 128, 8
    $region49: #{tpu_custom_call.1} parent=1 // pred_fallthru
      _
    // Predicated region
    $region50: #{tpu_custom_call.1} parent=1 // pred_check
      _
    $region51: #{tpu_custom_call.1} parent=1 // pred_check_branch
      %121 = sbr.rel (0) target = $region53
    $region52: #{tpu_custom_call.1} parent=1 // pred_region
      _
    $region53: #{tpu_custom_call.1} parent=1 // pred_fallthru
      _
    // Predicated region
    $region54: #{tpu_custom_call.1} parent=1 // pred_check
      _
    $region55: #{tpu_custom_call.1} parent=1 // pred_check_branch
      %123 = sbr.rel (0) target = $region57
    $region56: #{tpu_custom_call.1} parent=1 // pred_region
      %s125 = ssub.s32 4096, 4096
      %126 = vsyncadd [#allocation15], %s125
      %s127 = sshll.u32 [#allocation14], 4
      %s128 = int_to_ptr.vmem [resolvable:$true] %s127
      %133 = dma.hbm_to_vmem [thread:$0]  %s13, 4096, %s128, [#allocation15], 256, 256, 16
    $region57: #{tpu_custom_call.1} parent=1 // pred_fallthru
      _
    // Predicated region
    $region58: #{tpu_custom_call.1} parent=1 // pred_check
      _
    $region59: #{tpu_custom_call.1} parent=1 // pred_check_branch
      %135 = sbr.rel (0) target = $region61
    $region60: #{tpu_custom_call.1} parent=1 // pred_region
      _
    $region61: #{tpu_custom_call.1} parent=1 // pred_fallthru
      _
    // Predicated region
    $region62: #{tpu_custom_call.1} parent=1 // pred_check
      _
    $region63: #{tpu_custom_call.1} parent=1 // pred_check_branch
      %137 = sbr.rel (0) target = $region65
    $region64: #{tpu_custom_call.1} parent=1 // pred_region
      %s139 = ssub.s32 4096, 4096
      %140 = vsyncadd [#allocation15], %s139
      %s141 = sshll.u32 [#allocation16], 4
      %s142 = int_to_ptr.vmem [resolvable:$true] %s141
      %147 = dma.hbm_to_vmem [thread:$0]  %s15, 4096, %s142, [#allocation15], 128, 128, 8
    $region65: #{tpu_custom_call.1} parent=1 // pred_fallthru
      _
    // Predicated region
    $region66: #{tpu_custom_call.1} parent=1 // pred_check
      _
    $region67: #{tpu_custom_call.1} parent=1 // pred_check_branch
      %149 = sbr.rel (0) target = $region69
    $region68: #{tpu_custom_call.1} parent=1 // pred_region
      _
    $region69: #{tpu_custom_call.1} parent=1 // pred_fallthru
      _
    // Predicated region
    $region70: #{tpu_custom_call.1} parent=1 // pred_check
      _
    $region71: #{tpu_custom_call.1} parent=1 // pred_check_branch
      %151 = sbr.rel (0) target = $region73
    $region72: #{tpu_custom_call.1} parent=1 // pred_region
      %152 = dma.done [#allocation3], 128
    $region73: #{tpu_custom_call.1} parent=1 // pred_fallthru
      _
    // Predicated region
    $region74: #{tpu_custom_call.1} parent=1 // pred_check
      _
    $region75: #{tpu_custom_call.1} parent=1 // pred_check_branch
      %154 = sbr.rel (0) target = $region77
    $region76: #{tpu_custom_call.1} parent=1 // pred_region
      %155 = dma.done [#allocation6], 4096
    $region77: #{tpu_custom_call.1} parent=1 // pred_fallthru
      _
    // Predicated region
    $region78: #{tpu_custom_call.1} parent=1 // pred_check
      _
    $region79: #{tpu_custom_call.1} parent=1 // pred_check_branch
      %157 = sbr.rel (0) target = $region81
    $region80: #{tpu_custom_call.1} parent=1 // pred_region
      %158 = dma.done [#allocation6], 4096
    $region81: #{tpu_custom_call.1} parent=1 // pred_fallthru
      _
    // Predicated region
    $region82: #{tpu_custom_call.1} parent=1 // pred_check
      _
    $region83: #{tpu_custom_call.1} parent=1 // pred_check_branch
      %160 = sbr.rel (0) target = $region85
    $region84: #{tpu_custom_call.1} parent=1 // pred_region
      %161 = dma.done [#allocation9], 2048
    $region85: #{tpu_custom_call.1} parent=1 // pred_fallthru
      _
    // Predicated region
    $region86: #{tpu_custom_call.1} parent=1 // pred_check
      _
    $region87: #{tpu_custom_call.1} parent=1 // pred_check_branch
      %163 = sbr.rel (0) target = $region89
    $region88: #{tpu_custom_call.1} parent=1 // pred_region
      %164 = dma.done [#allocation9], 2048
    $region89: #{tpu_custom_call.1} parent=1 // pred_fallthru
      _
    // Predicated region
    $region90: #{tpu_custom_call.1} parent=1 // pred_check
      _
    $region91: #{tpu_custom_call.1} parent=1 // pred_check_branch
      %166 = sbr.rel (0) target = $region93
    $region92: #{tpu_custom_call.1} parent=1 // pred_region
      %167 = dma.done [#allocation12], 2048
    $region93: #{tpu_custom_call.1} parent=1 // pred_fallthru
      _
    // Predicated region
    $region94: #{tpu_custom_call.1} parent=1 // pred_check
      _
    $region95: #{tpu_custom_call.1} parent=1 // pred_check_branch
      %169 = sbr.rel (0) target = $region97
    $region96: #{tpu_custom_call.1} parent=1 // pred_region
      %170 = dma.done [#allocation12], 2048
    $region97: #{tpu_custom_call.1} parent=1 // pred_fallthru
      _
    // Predicated region
    $region98: #{tpu_custom_call.1} parent=1 // pred_check
      _
    $region99: #{tpu_custom_call.1} parent=1 // pred_check_branch
      %172 = sbr.rel (0) target = $region101
    $region100: #{tpu_custom_call.1} parent=1 // pred_region
      %173 = dma.done [#allocation15], 4096
    $region101: #{tpu_custom_call.1} parent=1 // pred_fallthru
      _
    // Predicated region
    $region102: #{tpu_custom_call.1} parent=1 // pred_check
      _
    $region103: #{tpu_custom_call.1} parent=1 // pred_check_branch
      %175 = sbr.rel (0) target = $region105
    $region104: #{tpu_custom_call.1} parent=1 // pred_region
      %176 = dma.done [#allocation15], 4096
    $region105: #{tpu_custom_call.1} parent=1 // pred_fallthru
      _
    %v177 = vld [vmem:[#allocation2] sm:$0xff]
    %v178 = vld [vmem:[#allocation5] sm:$0xff]
    %v179 = vld [vmem:[#allocation5 + $0x8] sm:$0xff]
    %v180 = vld [vmem:[#allocation5 + $0x10] sm:$0xff]
    %v181 = vld [vmem:[#allocation5 + $0x18] sm:$0xff]
    %v182 = vld [vmem:[#allocation5 + $0x20] sm:$0xff]
    %v183 = vld [vmem:[#allocation5 + $0x28] sm:$0xff]
    %v184 = vld [vmem:[#allocation5 + $0x30] sm:$0xff]
    %v185 = vld [vmem:[#allocation5 + $0x38] sm:$0xff]
    %v186 = vld [vmem:[#allocation5 + $0x40] sm:$0xff]
    %v187 = vld [vmem:[#allocation5 + $0x48] sm:$0xff]
    %v188 = vld [vmem:[#allocation5 + $0x50] sm:$0xff]
    %v189 = vld [vmem:[#allocation5 + $0x58] sm:$0xff]
    %v190 = vld [vmem:[#allocation5 + $0x60] sm:$0xff]
    %v191 = vld [vmem:[#allocation5 + $0x68] sm:$0xff]
    %v192 = vld [vmem:[#allocation5 + $0x70] sm:$0xff]
    %v193 = vld [vmem:[#allocation5 + $0x78] sm:$0xff]
    %v194 = vld [vmem:[#allocation5 + $0x80] sm:$0xff]
    %v195 = vld [vmem:[#allocation5 + $0x88] sm:$0xff]
    %v196 = vld [vmem:[#allocation5 + $0x90] sm:$0xff]
    %v197 = vld [vmem:[#allocation5 + $0x98] sm:$0xff]
    %v198 = vld [vmem:[#allocation5 + $0xa0] sm:$0xff]
    %v199 = vld [vmem:[#allocation5 + $0xa8] sm:$0xff]
    %v200 = vld [vmem:[#allocation5 + $0xb0] sm:$0xff]
    %v201 = vld [vmem:[#allocation5 + $0xb8] sm:$0xff]
    %v202 = vld [vmem:[#allocation5 + $0xc0] sm:$0xff]
    %v203 = vld [vmem:[#allocation5 + $0xc8] sm:$0xff]
    %v204 = vld [vmem:[#allocation5 + $0xd0] sm:$0xff]
    %v205 = vld [vmem:[#allocation5 + $0xd8] sm:$0xff]
    %v206 = vld [vmem:[#allocation5 + $0xe0] sm:$0xff]
    %v207 = vld [vmem:[#allocation5 + $0xe8] sm:$0xff]
    %v208 = vld [vmem:[#allocation5 + $0xf0] sm:$0xff]
    %v209 = vld [vmem:[#allocation5 + $0xf8] sm:$0xff]
    %v210 = vld [vmem:[%s2] sm:$0x3]
    %v212 = vlaneseq
    %v213 = vshrl.u32 %v212, 7
    %v214 = vsub.s32 0, %v213
    %v215 = vrot.slane %v210, %v214
    %v216 = vlaneseq
    %v217 = vshrl.u32 %v216, 7
    %v218 = vsub.s32 1, %v217
    %v219 = vrot.slane %v210, %v218
    %222 = vmatprep.subr.mxu0 %v209
    %223 = vmatpush1.msra.mxu0 %v208
    %224 = vmatprep.subr.mxu0 %v207
    %225 = vmatpush1.msra.mxu0 %v206
    %226 = vmatprep.subr.mxu0 %v205
    %227 = vmatpush1.msra.mxu0 %v204
    %228 = vmatprep.subr.mxu0 %v203
    %229 = vmatpush1.msra.mxu0 %v202
    %230 = vmatprep.subr.mxu0 %v201
    %231 = vmatpush1.msra.mxu0 %v200
    %232 = vmatprep.subr.mxu0 %v199
    %233 = vmatpush1.msra.mxu0 %v198
    %234 = vmatprep.subr.mxu0 %v197
    %235 = vmatpush1.msra.mxu0 %v196
    %236 = vmatprep.subr.mxu0 %v195
    %237 = vmatpush1.msra.mxu0 %v194
    %238 = vmatprep.subr.mxu0 %v193
    %239 = vmatpush1.msra.mxu0 %v192
    %240 = vmatprep.subr.mxu0 %v191
    %241 = vmatpush1.msra.mxu0 %v190
    %242 = vmatprep.subr.mxu0 %v189
    %243 = vmatpush1.msra.mxu0 %v188
    %244 = vmatprep.subr.mxu0 %v187
    %245 = vmatpush1.msra.mxu0 %v186
    %246 = vmatprep.subr.mxu0 %v185
    %247 = vmatpush1.msra.mxu0 %v184
    %248 = vmatprep.subr.mxu0 %v183
    %249 = vmatpush1.msra.mxu0 %v182
    %250 = vmatprep.subr.mxu0 %v181
    %251 = vmatpush1.msra.mxu0 %v180
    %252 = vmatprep.subr.mxu0 %v179
    %253 = vmatpush1.msra.mxu0 %v178
    %254 = vmatprep.subr.mxu0 0.0
    %255 = vmatpush2.msra.mxu0 0.0
    %256 = vmatprep.subr.mxu0 0.0
    %257 = vmatpush2.msra.mxu0 0.0
    %258 = vmatprep.subr.mxu0 0.0
    %259 = vmatpush2.msra.mxu0 0.0
    %260 = vmatprep.subr.mxu0 0.0
    %261 = vmatpush2.msra.mxu0 0.0
    %262 = vmatprep.subr.mxu0 0.0
    %263 = vmatpush2.msra.mxu0 0.0
    %264 = vmatprep.subr.mxu0 0.0
    %265 = vmatpush2.msra.mxu0 0.0
    %266 = vmatprep.subr.mxu0 0.0
    %267 = vmatpush2.msra.mxu0 0.0
    %268 = vmatprep.subr.mxu0 0.0
    %269 = vmatpush2.msra.mxu0 0.0
    %270 = vmatprep.subr.mxu0 0.0
    %271 = vmatpush2.msra.mxu0 0.0
    %272 = vmatprep.subr.mxu0 0.0
    %273 = vmatpush2.msra.mxu0 0.0
    %274 = vmatprep.subr.mxu0 0.0
    %275 = vmatpush2.msra.mxu0 0.0
    %276 = vmatprep.subr.mxu0 0.0
    %277 = vmatpush2.msra.mxu0 0.0
    %278 = vmatprep.subr.mxu0 0.0
    %279 = vmatpush2.msra.mxu0 0.0
    %280 = vmatprep.subr.mxu0 0.0
    %281 = vmatpush2.msra.mxu0 0.0
    %282 = vmatprep.subr.mxu0 0.0
    %283 = vmatpush2.msra.mxu0 0.0
    %284 = vmatprep.subr.mxu0 0.0
    %285 = vmatpush2.msra.mxu0 0.0
    %286 = vmatprep.mubr.f32.mxu0 0.0
    %287 = vmatmul.mubr.f32.gmra.mxu0 %v177
    %v288 = vpop.f32.mrf.mxu0
    %v289 = vadd.f32 %v215, %v288
    %v290 = vpop.f32.mrf.mxu0
    %v291 = vadd.f32 %v219, %v290
    %292 = vdwg.mxu0
    %vm293 = vcmp.gt.f32.partialorder %v289, 0.0
    %vm294 = vcmp.gt.f32.partialorder %v291, 0.0
    %v295 = vmul.f32 %v289, 0.01
    %v296 = vmul.f32 %v291, 0.01
    %v297 = vsel %vm293, %v289, %v295
    %v298 = vsel %vm294, %v291, %v296
    %v299 = vld [vmem:[#allocation7] sm:$0xff]
    %v300 = vld [vmem:[#allocation7 + $0x8] sm:$0xff]
    %v301 = vld [vmem:[#allocation7 + $0x10] sm:$0xff]
    %v302 = vld [vmem:[#allocation7 + $0x18] sm:$0xff]
    %v303 = vld [vmem:[#allocation7 + $0x20] sm:$0xff]
    %v304 = vld [vmem:[#allocation7 + $0x28] sm:$0xff]
    %v305 = vld [vmem:[#allocation7 + $0x30] sm:$0xff]
    %v306 = vld [vmem:[#allocation7 + $0x38] sm:$0xff]
    %v307 = vld [vmem:[#allocation7 + $0x40] sm:$0xff]
    %v308 = vld [vmem:[#allocation7 + $0x48] sm:$0xff]
    %v309 = vld [vmem:[#allocation7 + $0x50] sm:$0xff]
    %v310 = vld [vmem:[#allocation7 + $0x58] sm:$0xff]
    %v311 = vld [vmem:[#allocation7 + $0x60] sm:$0xff]
    %v312 = vld [vmem:[#allocation7 + $0x68] sm:$0xff]
    %v313 = vld [vmem:[#allocation7 + $0x70] sm:$0xff]
    %v314 = vld [vmem:[#allocation7 + $0x78] sm:$0xff]
    %v315 = vld [vmem:[#allocation7 + $0x80] sm:$0xff]
    %v316 = vld [vmem:[#allocation7 + $0x88] sm:$0xff]
    %v317 = vld [vmem:[#allocation7 + $0x90] sm:$0xff]
    %v318 = vld [vmem:[#allocation7 + $0x98] sm:$0xff]
    %v319 = vld [vmem:[#allocation7 + $0xa0] sm:$0xff]
    %v320 = vld [vmem:[#allocation7 + $0xa8] sm:$0xff]
    %v321 = vld [vmem:[#allocation7 + $0xb0] sm:$0xff]
    %v322 = vld [vmem:[#allocation7 + $0xb8] sm:$0xff]
    %v323 = vld [vmem:[#allocation7 + $0xc0] sm:$0xff]
    %v324 = vld [vmem:[#allocation7 + $0xc8] sm:$0xff]
    %v325 = vld [vmem:[#allocation7 + $0xd0] sm:$0xff]
    %v326 = vld [vmem:[#allocation7 + $0xd8] sm:$0xff]
    %v327 = vld [vmem:[#allocation7 + $0xe0] sm:$0xff]
    %v328 = vld [vmem:[#allocation7 + $0xe8] sm:$0xff]
    %v329 = vld [vmem:[#allocation7 + $0xf0] sm:$0xff]
    %v330 = vld [vmem:[#allocation7 + $0xf8] sm:$0xff]
    %v331 = vld [vmem:[%s4] sm:$0x1]
    %v333 = vlaneseq
    %v334 = vshrl.u32 %v333, 7
    %v335 = vsub.s32 0, %v334
    %v336 = vrot.slane %v331, %v335
    %338 = vmatprep.subr.mxu0 0.0
    %339 = vmatpush1.msra.mxu0 %v314
    %340 = vmatprep.subr.mxu0 0.0
    %341 = vmatpush1.msra.mxu0 %v313
    %342 = vmatprep.subr.mxu0 0.0
    %343 = vmatpush1.msra.mxu0 %v312
    %344 = vmatprep.subr.mxu0 0.0
    %345 = vmatpush1.msra.mxu0 %v311
    %346 = vmatprep.subr.mxu0 0.0
    %347 = vmatpush1.msra.mxu0 %v310
    %348 = vmatprep.subr.mxu0 0.0
    %349 = vmatpush1.msra.mxu0 %v309
    %350 = vmatprep.subr.mxu0 0.0
    %351 = vmatpush1.msra.mxu0 %v308
    %352 = vmatprep.subr.mxu0 0.0
    %353 = vmatpush1.msra.mxu0 %v307
    %354 = vmatprep.subr.mxu0 0.0
    %355 = vmatpush1.msra.mxu0 %v306
    %356 = vmatprep.subr.mxu0 0.0
    %357 = vmatpush1.msra.mxu0 %v305
    %358 = vmatprep.subr.mxu0 0.0
    %359 = vmatpush1.msra.mxu0 %v304
    %360 = vmatprep.subr.mxu0 0.0
    %361 = vmatpush1.msra.mxu0 %v303
    %362 = vmatprep.subr.mxu0 0.0
    %363 = vmatpush1.msra.mxu0 %v302
    %364 = vmatprep.subr.mxu0 0.0
    %365 = vmatpush1.msra.mxu0 %v301
    %366 = vmatprep.subr.mxu0 0.0
    %367 = vmatpush1.msra.mxu0 %v300
    %368 = vmatprep.subr.mxu0 0.0
    %369 = vmatpush1.msra.mxu0 %v299
    %370 = vmatprep.subr.mxu0 0.0
    %371 = vmatpush2.msra.mxu0 %v330
    %372 = vmatprep.subr.mxu0 0.0
    %373 = vmatpush2.msra.mxu0 %v329
    %374 = vmatprep.subr.mxu0 0.0
    %375 = vmatpush2.msra.mxu0 %v328
    %376 = vmatprep.subr.mxu0 0.0
    %377 = vmatpush2.msra.mxu0 %v327
    %378 = vmatprep.subr.mxu0 0.0
    %379 = vmatpush2.msra.mxu0 %v326
    %380 = vmatprep.subr.mxu0 0.0
    %381 = vmatpush2.msra.mxu0 %v325
    %382 = vmatprep.subr.mxu0 0.0
    %383 = vmatpush2.msra.mxu0 %v324
    %384 = vmatprep.subr.mxu0 0.0
    %385 = vmatpush2.msra.mxu0 %v323
    %386 = vmatprep.subr.mxu0 0.0
    %387 = vmatpush2.msra.mxu0 %v322
    %388 = vmatprep.subr.mxu0 0.0
    %389 = vmatpush2.msra.mxu0 %v321
    %390 = vmatprep.subr.mxu0 0.0
    %391 = vmatpush2.msra.mxu0 %v320
    %392 = vmatprep.subr.mxu0 0.0
    %393 = vmatpush2.msra.mxu0 %v319
    %394 = vmatprep.subr.mxu0 0.0
    %395 = vmatpush2.msra.mxu0 %v318
    %396 = vmatprep.subr.mxu0 0.0
    %397 = vmatpush2.msra.mxu0 %v317
    %398 = vmatprep.subr.mxu0 0.0
    %399 = vmatpush2.msra.mxu0 %v316
    %400 = vmatprep.subr.mxu0 0.0
    %401 = vmatpush2.msra.mxu0 %v315
    %402 = vmatprep.mubr.f32.mxu0 %v298
    %403 = vmatmul.mubr.f32.gmra.mxu0 %v297
    %v404 = vpop.f32.mrf.mxu0
    %v405 = vadd.f32 %v336, %v404
    %v406 = vpop.f32.mrf.mxu0
    %407 = vdwg.mxu0
    %vm408 = vcmp.gt.f32.partialorder %v405, 0.0
    %v409 = vmul.f32 %v405, 0.01
    %v410 = vsel %vm408, %v405, %v409
    %v411 = vld [vmem:[#allocation8] sm:$0xff]
    %v412 = vld [vmem:[#allocation8 + $0x8] sm:$0xff]
    %v413 = vld [vmem:[#allocation8 + $0x10] sm:$0xff]
    %v414 = vld [vmem:[#allocation8 + $0x18] sm:$0xff]
    %v415 = vld [vmem:[#allocation8 + $0x20] sm:$0xff]
    %v416 = vld [vmem:[#allocation8 + $0x28] sm:$0xff]
    %v417 = vld [vmem:[#allocation8 + $0x30] sm:$0xff]
    %v418 = vld [vmem:[#allocation8 + $0x38] sm:$0xff]
    %v419 = vld [vmem:[#allocation8 + $0x40] sm:$0xff]
    %v420 = vld [vmem:[#allocation8 + $0x48] sm:$0xff]
    %v421 = vld [vmem:[#allocation8 + $0x50] sm:$0xff]
    %v422 = vld [vmem:[#allocation8 + $0x58] sm:$0xff]
    %v423 = vld [vmem:[#allocation8 + $0x60] sm:$0xff]
    %v424 = vld [vmem:[#allocation8 + $0x68] sm:$0xff]
    %v425 = vld [vmem:[#allocation8 + $0x70] sm:$0xff]
    %v426 = vld [vmem:[#allocation8 + $0x78] sm:$0xff]
    %v427 = vld [vmem:[%s6] sm:$0x1]
    %v429 = vlaneseq
    %v430 = vshrl.u32 %v429, 7
    %v431 = vsub.s32 0, %v430
    %v432 = vrot.slane %v427, %v431
    %434 = vmatprep.subr.mxu0 0.0
    %435 = vmatpush1.msra.mxu0 %v426
    %436 = vmatprep.subr.mxu0 0.0
    %437 = vmatpush1.msra.mxu0 %v425
    %438 = vmatprep.subr.mxu0 0.0
    %439 = vmatpush1.msra.mxu0 %v424
    %440 = vmatprep.subr.mxu0 0.0
    %441 = vmatpush1.msra.mxu0 %v423
    %442 = vmatprep.subr.mxu0 0.0
    %443 = vmatpush1.msra.mxu0 %v422
    %444 = vmatprep.subr.mxu0 0.0
    %445 = vmatpush1.msra.mxu0 %v421
    %446 = vmatprep.subr.mxu0 0.0
    %447 = vmatpush1.msra.mxu0 %v420
    %448 = vmatprep.subr.mxu0 0.0
    %449 = vmatpush1.msra.mxu0 %v419
    %450 = vmatprep.subr.mxu0 0.0
    %451 = vmatpush1.msra.mxu0 %v418
    %452 = vmatprep.subr.mxu0 0.0
    %453 = vmatpush1.msra.mxu0 %v417
    %454 = vmatprep.subr.mxu0 0.0
    %455 = vmatpush1.msra.mxu0 %v416
    %456 = vmatprep.subr.mxu0 0.0
    %457 = vmatpush1.msra.mxu0 %v415
    %458 = vmatprep.subr.mxu0 0.0
    %459 = vmatpush1.msra.mxu0 %v414
    %460 = vmatprep.subr.mxu0 0.0
    %461 = vmatpush1.msra.mxu0 %v413
    %462 = vmatprep.subr.mxu0 0.0
    %463 = vmatpush1.msra.mxu0 %v412
    %464 = vmatprep.subr.mxu0 0.0
    %465 = vmatpush1.msra.mxu0 %v411
    %466 = vmatprep.subr.mxu0 0.0
    %467 = vmatpush2.msra.mxu0 0.0
    %468 = vmatprep.subr.mxu0 0.0
    %469 = vmatpush2.msra.mxu0 0.0
    %470 = vmatprep.subr.mxu0 0.0
    %471 = vmatpush2.msra.mxu0 0.0
    %472 = vmatprep.subr.mxu0 0.0
    %473 = vmatpush2.msra.mxu0 0.0
    %474 = vmatprep.subr.mxu0 0.0
    %475 = vmatpush2.msra.mxu0 0.0
    %476 = vmatprep.subr.mxu0 0.0
    %477 = vmatpush2.msra.mxu0 0.0
    %478 = vmatprep.subr.mxu0 0.0
    %479 = vmatpush2.msra.mxu0 0.0
    %480 = vmatprep.subr.mxu0 0.0
    %481 = vmatpush2.msra.mxu0 0.0
    %482 = vmatprep.subr.mxu0 0.0
    %483 = vmatpush2.msra.mxu0 0.0
    %484 = vmatprep.subr.mxu0 0.0
    %485 = vmatpush2.msra.mxu0 0.0
    %486 = vmatprep.subr.mxu0 0.0
    %487 = vmatpush2.msra.mxu0 0.0
    %488 = vmatprep.subr.mxu0 0.0
    %489 = vmatpush2.msra.mxu0 0.0
    %490 = vmatprep.subr.mxu0 0.0
    %491 = vmatpush2.msra.mxu0 0.0
    %492 = vmatprep.subr.mxu0 0.0
    %493 = vmatpush2.msra.mxu0 0.0
    %494 = vmatprep.subr.mxu0 0.0
    %495 = vmatpush2.msra.mxu0 0.0
    %496 = vmatprep.subr.mxu0 0.0
    %497 = vmatpush2.msra.mxu0 0.0
    %498 = vmatprep.mubr.f32.mxu0 0.0
    %499 = vmatmul.mubr.f32.gmra.mxu0 %v410
    %v500 = vpop.f32.mrf.mxu0
    %v501 = vadd.f32 %v432, %v500
    %v502 = vpop.f32.mrf.mxu0
    %503 = vdwg.mxu0
    %vm504 = vcmp.gt.f32.partialorder %v501, 0.0
    %v505 = vmul.f32 %v501, 0.01
    %v506 = vsel %vm504, %v501, %v505
    %v507 = vld [vmem:[#allocation10] sm:$0xff]
    %v508 = vld [vmem:[#allocation10 + $0x8] sm:$0xff]
    %v509 = vld [vmem:[#allocation10 + $0x10] sm:$0xff]
    %v510 = vld [vmem:[#allocation10 + $0x18] sm:$0xff]
    %v511 = vld [vmem:[#allocation10 + $0x20] sm:$0xff]
    %v512 = vld [vmem:[#allocation10 + $0x28] sm:$0xff]
    %v513 = vld [vmem:[#allocation10 + $0x30] sm:$0xff]
    %v514 = vld [vmem:[#allocation10 + $0x38] sm:$0xff]
    %v515 = vld [vmem:[#allocation10 + $0x40] sm:$0xff]
    %v516 = vld [vmem:[#allocation10 + $0x48] sm:$0xff]
    %v517 = vld [vmem:[#allocation10 + $0x50] sm:$0xff]
    %v518 = vld [vmem:[#allocation10 + $0x58] sm:$0xff]
    %v519 = vld [vmem:[#allocation10 + $0x60] sm:$0xff]
    %v520 = vld [vmem:[#allocation10 + $0x68] sm:$0xff]
    %v521 = vld [vmem:[#allocation10 + $0x70] sm:$0xff]
    %v522 = vld [vmem:[#allocation10 + $0x78] sm:$0xff]
    %v523 = vld [vmem:[%s8] sm:$0x1]
    %v525 = vlaneseq
    %v526 = vshrl.u32 %v525, 7
    %v527 = vsub.s32 0, %v526
    %v528 = vrot.slane %v523, %v527
    %530 = vmatprep.subr.mxu0 0.0
    %531 = vmatpush1.msra.mxu0 %v522
    %532 = vmatprep.subr.mxu0 0.0
    %533 = vmatpush1.msra.mxu0 %v521
    %534 = vmatprep.subr.mxu0 0.0
    %535 = vmatpush1.msra.mxu0 %v520
    %536 = vmatprep.subr.mxu0 0.0
    %537 = vmatpush1.msra.mxu0 %v519
    %538 = vmatprep.subr.mxu0 0.0
    %539 = vmatpush1.msra.mxu0 %v518
    %540 = vmatprep.subr.mxu0 0.0
    %541 = vmatpush1.msra.mxu0 %v517
    %542 = vmatprep.subr.mxu0 0.0
    %543 = vmatpush1.msra.mxu0 %v516
    %544 = vmatprep.subr.mxu0 0.0
    %545 = vmatpush1.msra.mxu0 %v515
    %546 = vmatprep.subr.mxu0 0.0
    %547 = vmatpush1.msra.mxu0 %v514
    %548 = vmatprep.subr.mxu0 0.0
    %549 = vmatpush1.msra.mxu0 %v513
    %550 = vmatprep.subr.mxu0 0.0
    %551 = vmatpush1.msra.mxu0 %v512
    %552 = vmatprep.subr.mxu0 0.0
    %553 = vmatpush1.msra.mxu0 %v511
    %554 = vmatprep.subr.mxu0 0.0
    %555 = vmatpush1.msra.mxu0 %v510
    %556 = vmatprep.subr.mxu0 0.0
    %557 = vmatpush1.msra.mxu0 %v509
    %558 = vmatprep.subr.mxu0 0.0
    %559 = vmatpush1.msra.mxu0 %v508
    %560 = vmatprep.subr.mxu0 0.0
    %561 = vmatpush1.msra.mxu0 %v507
    %562 = vmatprep.subr.mxu0 0.0
    %563 = vmatpush2.msra.mxu0 0.0
    %564 = vmatprep.subr.mxu0 0.0
    %565 = vmatpush2.msra.mxu0 0.0
    %566 = vmatprep.subr.mxu0 0.0
    %567 = vmatpush2.msra.mxu0 0.0
    %568 = vmatprep.subr.mxu0 0.0
    %569 = vmatpush2.msra.mxu0 0.0
    %570 = vmatprep.subr.mxu0 0.0
    %571 = vmatpush2.msra.mxu0 0.0
    %572 = vmatprep.subr.mxu0 0.0
    %573 = vmatpush2.msra.mxu0 0.0
    %574 = vmatprep.subr.mxu0 0.0
    %575 = vmatpush2.msra.mxu0 0.0
    %576 = vmatprep.subr.mxu0 0.0
    %577 = vmatpush2.msra.mxu0 0.0
    %578 = vmatprep.subr.mxu0 0.0
    %579 = vmatpush2.msra.mxu0 0.0
    %580 = vmatprep.subr.mxu0 0.0
    %581 = vmatpush2.msra.mxu0 0.0
    %582 = vmatprep.subr.mxu0 0.0
    %583 = vmatpush2.msra.mxu0 0.0
    %584 = vmatprep.subr.mxu0 0.0
    %585 = vmatpush2.msra.mxu0 0.0
    %586 = vmatprep.subr.mxu0 0.0
    %587 = vmatpush2.msra.mxu0 0.0
    %588 = vmatprep.subr.mxu0 0.0
    %589 = vmatpush2.msra.mxu0 0.0
    %590 = vmatprep.subr.mxu0 0.0
    %591 = vmatpush2.msra.mxu0 0.0
    %592 = vmatprep.subr.mxu0 0.0
    %593 = vmatpush2.msra.mxu0 0.0
    %594 = vmatprep.mubr.f32.mxu0 0.0
    %595 = vmatmul.mubr.f32.gmra.mxu0 %v506
    %v596 = vpop.f32.mrf.mxu0
    %v597 = vadd.f32 %v528, %v596
    %v598 = vpop.f32.mrf.mxu0
    %599 = vdwg.mxu0
    %v600 = vld [vmem:[#allocation11] sm:$0xff]
    %v601 = vld [vmem:[#allocation11 + $0x8] sm:$0xff]
    %v602 = vld [vmem:[#allocation11 + $0x10] sm:$0xff]
    %v603 = vld [vmem:[#allocation11 + $0x18] sm:$0xff]
    %v604 = vld [vmem:[#allocation11 + $0x20] sm:$0xff]
    %v605 = vld [vmem:[#allocation11 + $0x28] sm:$0xff]
    %v606 = vld [vmem:[#allocation11 + $0x30] sm:$0xff]
    %v607 = vld [vmem:[#allocation11 + $0x38] sm:$0xff]
    %v608 = vld [vmem:[#allocation11 + $0x40] sm:$0xff]
    %v609 = vld [vmem:[#allocation11 + $0x48] sm:$0xff]
    %v610 = vld [vmem:[#allocation11 + $0x50] sm:$0xff]
    %v611 = vld [vmem:[#allocation11 + $0x58] sm:$0xff]
    %v612 = vld [vmem:[#allocation11 + $0x60] sm:$0xff]
    %v613 = vld [vmem:[#allocation11 + $0x68] sm:$0xff]
    %v614 = vld [vmem:[#allocation11 + $0x70] sm:$0xff]
    %v615 = vld [vmem:[#allocation11 + $0x78] sm:$0xff]
    %v616 = vld [vmem:[%s10] sm:$0x1]
    %v618 = vlaneseq
    %v619 = vshrl.u32 %v618, 7
    %v620 = vsub.s32 0, %v619
    %v621 = vrot.slane %v616, %v620
    %623 = vmatprep.subr.mxu0 0.0
    %624 = vmatpush1.msra.mxu0 %v615
    %625 = vmatprep.subr.mxu0 0.0
    %626 = vmatpush1.msra.mxu0 %v614
    %627 = vmatprep.subr.mxu0 0.0
    %628 = vmatpush1.msra.mxu0 %v613
    %629 = vmatprep.subr.mxu0 0.0
    %630 = vmatpush1.msra.mxu0 %v612
    %631 = vmatprep.subr.mxu0 0.0
    %632 = vmatpush1.msra.mxu0 %v611
    %633 = vmatprep.subr.mxu0 0.0
    %634 = vmatpush1.msra.mxu0 %v610
    %635 = vmatprep.subr.mxu0 0.0
    %636 = vmatpush1.msra.mxu0 %v609
    %637 = vmatprep.subr.mxu0 0.0
    %638 = vmatpush1.msra.mxu0 %v608
    %639 = vmatprep.subr.mxu0 0.0
    %640 = vmatpush1.msra.mxu0 %v607
    %641 = vmatprep.subr.mxu0 0.0
    %642 = vmatpush1.msra.mxu0 %v606
    %643 = vmatprep.subr.mxu0 0.0
    %644 = vmatpush1.msra.mxu0 %v605
    %645 = vmatprep.subr.mxu0 0.0
    %646 = vmatpush1.msra.mxu0 %v604
    %647 = vmatprep.subr.mxu0 0.0
    %648 = vmatpush1.msra.mxu0 %v603
    %649 = vmatprep.subr.mxu0 0.0
    %650 = vmatpush1.msra.mxu0 %v602
    %651 = vmatprep.subr.mxu0 0.0
    %652 = vmatpush1.msra.mxu0 %v601
    %653 = vmatprep.subr.mxu0 0.0
    %654 = vmatpush1.msra.mxu0 %v600
    %655 = vmatprep.subr.mxu0 0.0
    %656 = vmatpush2.msra.mxu0 0.0
    %657 = vmatprep.subr.mxu0 0.0
    %658 = vmatpush2.msra.mxu0 0.0
    %659 = vmatprep.subr.mxu0 0.0
    %660 = vmatpush2.msra.mxu0 0.0
    %661 = vmatprep.subr.mxu0 0.0
    %662 = vmatpush2.msra.mxu0 0.0
    %663 = vmatprep.subr.mxu0 0.0
    %664 = vmatpush2.msra.mxu0 0.0
    %665 = vmatprep.subr.mxu0 0.0
    %666 = vmatpush2.msra.mxu0 0.0
    %667 = vmatprep.subr.mxu0 0.0
    %668 = vmatpush2.msra.mxu0 0.0
    %669 = vmatprep.subr.mxu0 0.0
    %670 = vmatpush2.msra.mxu0 0.0
    %671 = vmatprep.subr.mxu0 0.0
    %672 = vmatpush2.msra.mxu0 0.0
    %673 = vmatprep.subr.mxu0 0.0
    %674 = vmatpush2.msra.mxu0 0.0
    %675 = vmatprep.subr.mxu0 0.0
    %676 = vmatpush2.msra.mxu0 0.0
    %677 = vmatprep.subr.mxu0 0.0
    %678 = vmatpush2.msra.mxu0 0.0
    %679 = vmatprep.subr.mxu0 0.0
    %680 = vmatpush2.msra.mxu0 0.0
    %681 = vmatprep.subr.mxu0 0.0
    %682 = vmatpush2.msra.mxu0 0.0
    %683 = vmatprep.subr.mxu0 0.0
    %684 = vmatpush2.msra.mxu0 0.0
    %685 = vmatprep.subr.mxu0 0.0
    %686 = vmatpush2.msra.mxu0 0.0
    %687 = vmatprep.mubr.f32.mxu0 0.0
    %688 = vmatmul.mubr.f32.gmra.mxu0 %v597
    %v689 = vpop.f32.mrf.mxu0
    %v690 = vadd.f32 %v621, %v689
    %v691 = vpop.f32.mrf.mxu0
    %692 = vdwg.mxu0
    %vm693 = vcmp.gt.f32.partialorder %v690, 0.0
    %v694 = vmul.f32 %v690, 0.01
    %v695 = vsel %vm693, %v690, %v694
    %v696 = vld [vmem:[#allocation13] sm:$0xff]
    %v697 = vld [vmem:[#allocation13 + $0x8] sm:$0xff]
    %v698 = vld [vmem:[#allocation13 + $0x10] sm:$0xff]
    %v699 = vld [vmem:[#allocation13 + $0x18] sm:$0xff]
    %v700 = vld [vmem:[#allocation13 + $0x20] sm:$0xff]
    %v701 = vld [vmem:[#allocation13 + $0x28] sm:$0xff]
    %v702 = vld [vmem:[#allocation13 + $0x30] sm:$0xff]
    %v703 = vld [vmem:[#allocation13 + $0x38] sm:$0xff]
    %v704 = vld [vmem:[#allocation13 + $0x40] sm:$0xff]
    %v705 = vld [vmem:[#allocation13 + $0x48] sm:$0xff]
    %v706 = vld [vmem:[#allocation13 + $0x50] sm:$0xff]
    %v707 = vld [vmem:[#allocation13 + $0x58] sm:$0xff]
    %v708 = vld [vmem:[#allocation13 + $0x60] sm:$0xff]
    %v709 = vld [vmem:[#allocation13 + $0x68] sm:$0xff]
    %v710 = vld [vmem:[#allocation13 + $0x70] sm:$0xff]
    %v711 = vld [vmem:[#allocation13 + $0x78] sm:$0xff]
    %v712 = vld [vmem:[%s12] sm:$0x1]
    %v714 = vlaneseq
    %v715 = vshrl.u32 %v714, 7
    %v716 = vsub.s32 0, %v715
    %v717 = vrot.slane %v712, %v716
    %719 = vmatprep.subr.mxu0 0.0
    %720 = vmatpush1.msra.mxu0 %v711
    %721 = vmatprep.subr.mxu0 0.0
    %722 = vmatpush1.msra.mxu0 %v710
    %723 = vmatprep.subr.mxu0 0.0
    %724 = vmatpush1.msra.mxu0 %v709
    %725 = vmatprep.subr.mxu0 0.0
    %726 = vmatpush1.msra.mxu0 %v708
    %727 = vmatprep.subr.mxu0 0.0
    %728 = vmatpush1.msra.mxu0 %v707
    %729 = vmatprep.subr.mxu0 0.0
    %730 = vmatpush1.msra.mxu0 %v706
    %731 = vmatprep.subr.mxu0 0.0
    %732 = vmatpush1.msra.mxu0 %v705
    %733 = vmatprep.subr.mxu0 0.0
    %734 = vmatpush1.msra.mxu0 %v704
    %735 = vmatprep.subr.mxu0 0.0
    %736 = vmatpush1.msra.mxu0 %v703
    %737 = vmatprep.subr.mxu0 0.0
    %738 = vmatpush1.msra.mxu0 %v702
    %739 = vmatprep.subr.mxu0 0.0
    %740 = vmatpush1.msra.mxu0 %v701
    %741 = vmatprep.subr.mxu0 0.0
    %742 = vmatpush1.msra.mxu0 %v700
    %743 = vmatprep.subr.mxu0 0.0
    %744 = vmatpush1.msra.mxu0 %v699
    %745 = vmatprep.subr.mxu0 0.0
    %746 = vmatpush1.msra.mxu0 %v698
    %747 = vmatprep.subr.mxu0 0.0
    %748 = vmatpush1.msra.mxu0 %v697
    %749 = vmatprep.subr.mxu0 0.0
    %750 = vmatpush1.msra.mxu0 %v696
    %751 = vmatprep.subr.mxu0 0.0
    %752 = vmatpush2.msra.mxu0 0.0
    %753 = vmatprep.subr.mxu0 0.0
    %754 = vmatpush2.msra.mxu0 0.0
    %755 = vmatprep.subr.mxu0 0.0
    %756 = vmatpush2.msra.mxu0 0.0
    %757 = vmatprep.subr.mxu0 0.0
    %758 = vmatpush2.msra.mxu0 0.0
    %759 = vmatprep.subr.mxu0 0.0
    %760 = vmatpush2.msra.mxu0 0.0
    %761 = vmatprep.subr.mxu0 0.0
    %762 = vmatpush2.msra.mxu0 0.0
    %763 = vmatprep.subr.mxu0 0.0
    %764 = vmatpush2.msra.mxu0 0.0
    %765 = vmatprep.subr.mxu0 0.0
    %766 = vmatpush2.msra.mxu0 0.0
    %767 = vmatprep.subr.mxu0 0.0
    %768 = vmatpush2.msra.mxu0 0.0
    %769 = vmatprep.subr.mxu0 0.0
    %770 = vmatpush2.msra.mxu0 0.0
    %771 = vmatprep.subr.mxu0 0.0
    %772 = vmatpush2.msra.mxu0 0.0
    %773 = vmatprep.subr.mxu0 0.0
    %774 = vmatpush2.msra.mxu0 0.0
    %775 = vmatprep.subr.mxu0 0.0
    %776 = vmatpush2.msra.mxu0 0.0
    %777 = vmatprep.subr.mxu0 0.0
    %778 = vmatpush2.msra.mxu0 0.0
    %779 = vmatprep.subr.mxu0 0.0
    %780 = vmatpush2.msra.mxu0 0.0
    %781 = vmatprep.subr.mxu0 0.0
    %782 = vmatpush2.msra.mxu0 0.0
    %783 = vmatprep.mubr.f32.mxu0 0.0
    %784 = vmatmul.mubr.f32.gmra.mxu0 %v695
    %v785 = vpop.f32.mrf.mxu0
    %v786 = vadd.f32 %v717, %v785
    %v787 = vpop.f32.mrf.mxu0
    %788 = vdwg.mxu0
    %vm789 = vcmp.gt.f32.partialorder %v786, 0.0
    %v790 = vmul.f32 %v786, 0.01
    %v791 = vsel %vm789, %v786, %v790
    %v792 = vld [vmem:[#allocation14] sm:$0xff]
    %v793 = vld [vmem:[#allocation14 + $0x8] sm:$0xff]
    %v794 = vld [vmem:[#allocation14 + $0x10] sm:$0xff]
    %v795 = vld [vmem:[#allocation14 + $0x18] sm:$0xff]
    %v796 = vld [vmem:[#allocation14 + $0x20] sm:$0xff]
    %v797 = vld [vmem:[#allocation14 + $0x28] sm:$0xff]
    %v798 = vld [vmem:[#allocation14 + $0x30] sm:$0xff]
    %v799 = vld [vmem:[#allocation14 + $0x38] sm:$0xff]
    %v800 = vld [vmem:[#allocation14 + $0x40] sm:$0xff]
    %v801 = vld [vmem:[#allocation14 + $0x48] sm:$0xff]
    %v802 = vld [vmem:[#allocation14 + $0x50] sm:$0xff]
    %v803 = vld [vmem:[#allocation14 + $0x58] sm:$0xff]
    %v804 = vld [vmem:[#allocation14 + $0x60] sm:$0xff]
    %v805 = vld [vmem:[#allocation14 + $0x68] sm:$0xff]
    %v806 = vld [vmem:[#allocation14 + $0x70] sm:$0xff]
    %v807 = vld [vmem:[#allocation14 + $0x78] sm:$0xff]
    %v808 = vld [vmem:[#allocation14 + $0x80] sm:$0xff]
    %v809 = vld [vmem:[#allocation14 + $0x88] sm:$0xff]
    %v810 = vld [vmem:[#allocation14 + $0x90] sm:$0xff]
    %v811 = vld [vmem:[#allocation14 + $0x98] sm:$0xff]
    %v812 = vld [vmem:[#allocation14 + $0xa0] sm:$0xff]
    %v813 = vld [vmem:[#allocation14 + $0xa8] sm:$0xff]
    %v814 = vld [vmem:[#allocation14 + $0xb0] sm:$0xff]
    %v815 = vld [vmem:[#allocation14 + $0xb8] sm:$0xff]
    %v816 = vld [vmem:[#allocation14 + $0xc0] sm:$0xff]
    %v817 = vld [vmem:[#allocation14 + $0xc8] sm:$0xff]
    %v818 = vld [vmem:[#allocation14 + $0xd0] sm:$0xff]
    %v819 = vld [vmem:[#allocation14 + $0xd8] sm:$0xff]
    %v820 = vld [vmem:[#allocation14 + $0xe0] sm:$0xff]
    %v821 = vld [vmem:[#allocation14 + $0xe8] sm:$0xff]
    %v822 = vld [vmem:[#allocation14 + $0xf0] sm:$0xff]
    %v823 = vld [vmem:[#allocation14 + $0xf8] sm:$0xff]
    %v824 = vld [vmem:[%s14] sm:$0x3]
    %v826 = vlaneseq
    %v827 = vshrl.u32 %v826, 7
    %v828 = vsub.s32 0, %v827
    %v829 = vrot.slane %v824, %v828
    %v830 = vlaneseq
    %v831 = vshrl.u32 %v830, 7
    %v832 = vsub.s32 1, %v831
    %v833 = vrot.slane %v824, %v832
    %836 = vmatprep.subr.mxu0 %v823
    %837 = vmatpush1.msra.mxu0 %v822
    %838 = vmatprep.subr.mxu0 %v821
    %839 = vmatpush1.msra.mxu0 %v820
    %840 = vmatprep.subr.mxu0 %v819
    %841 = vmatpush1.msra.mxu0 %v818
    %842 = vmatprep.subr.mxu0 %v817
    %843 = vmatpush1.msra.mxu0 %v816
    %844 = vmatprep.subr.mxu0 %v815
    %845 = vmatpush1.msra.mxu0 %v814
    %846 = vmatprep.subr.mxu0 %v813
    %847 = vmatpush1.msra.mxu0 %v812
    %848 = vmatprep.subr.mxu0 %v811
    %849 = vmatpush1.msra.mxu0 %v810
    %850 = vmatprep.subr.mxu0 %v809
    %851 = vmatpush1.msra.mxu0 %v808
    %852 = vmatprep.subr.mxu0 %v807
    %853 = vmatpush1.msra.mxu0 %v806
    %854 = vmatprep.subr.mxu0 %v805
    %855 = vmatpush1.msra.mxu0 %v804
    %856 = vmatprep.subr.mxu0 %v803
    %857 = vmatpush1.msra.mxu0 %v802
    %858 = vmatprep.subr.mxu0 %v801
    %859 = vmatpush1.msra.mxu0 %v800
    %860 = vmatprep.subr.mxu0 %v799
    %861 = vmatpush1.msra.mxu0 %v798
    %862 = vmatprep.subr.mxu0 %v797
    %863 = vmatpush1.msra.mxu0 %v796
    %864 = vmatprep.subr.mxu0 %v795
    %865 = vmatpush1.msra.mxu0 %v794
    %866 = vmatprep.subr.mxu0 %v793
    %867 = vmatpush1.msra.mxu0 %v792
    %868 = vmatprep.subr.mxu0 0.0
    %869 = vmatpush2.msra.mxu0 0.0
    %870 = vmatprep.subr.mxu0 0.0
    %871 = vmatpush2.msra.mxu0 0.0
    %872 = vmatprep.subr.mxu0 0.0
    %873 = vmatpush2.msra.mxu0 0.0
    %874 = vmatprep.subr.mxu0 0.0
    %875 = vmatpush2.msra.mxu0 0.0
    %876 = vmatprep.subr.mxu0 0.0
    %877 = vmatpush2.msra.mxu0 0.0
    %878 = vmatprep.subr.mxu0 0.0
    %879 = vmatpush2.msra.mxu0 0.0
    %880 = vmatprep.subr.mxu0 0.0
    %881 = vmatpush2.msra.mxu0 0.0
    %882 = vmatprep.subr.mxu0 0.0
    %883 = vmatpush2.msra.mxu0 0.0
    %884 = vmatprep.subr.mxu0 0.0
    %885 = vmatpush2.msra.mxu0 0.0
    %886 = vmatprep.subr.mxu0 0.0
    %887 = vmatpush2.msra.mxu0 0.0
    %888 = vmatprep.subr.mxu0 0.0
    %889 = vmatpush2.msra.mxu0 0.0
    %890 = vmatprep.subr.mxu0 0.0
    %891 = vmatpush2.msra.mxu0 0.0
    %892 = vmatprep.subr.mxu0 0.0
    %893 = vmatpush2.msra.mxu0 0.0
    %894 = vmatprep.subr.mxu0 0.0
    %895 = vmatpush2.msra.mxu0 0.0
    %896 = vmatprep.subr.mxu0 0.0
    %897 = vmatpush2.msra.mxu0 0.0
    %898 = vmatprep.subr.mxu0 0.0
    %899 = vmatpush2.msra.mxu0 0.0
    %900 = vmatprep.mubr.f32.mxu0 0.0
    %901 = vmatmul.mubr.f32.gmra.mxu0 %v791
    %v902 = vpop.f32.mrf.mxu0
    %v903 = vadd.f32 %v829, %v902
    %v904 = vpop.f32.mrf.mxu0
    %v905 = vadd.f32 %v833, %v904
    %906 = vdwg.mxu0
    %vm907 = vcmp.gt.f32.partialorder %v903, 0.0
    %vm908 = vcmp.gt.f32.partialorder %v905, 0.0
    %v909 = vmul.f32 %v903, 0.01
    %v910 = vmul.f32 %v905, 0.01
    %v911 = vsel %vm907, %v903, %v909
    %v912 = vsel %vm908, %v905, %v910
    %v913 = vld [vmem:[#allocation16] sm:$0xff]
    %v914 = vld [vmem:[#allocation16 + $0x8] sm:$0xff]
    %v915 = vld [vmem:[#allocation16 + $0x10] sm:$0xff]
    %v916 = vld [vmem:[#allocation16 + $0x18] sm:$0xff]
    %v917 = vld [vmem:[#allocation16 + $0x20] sm:$0xff]
    %v918 = vld [vmem:[#allocation16 + $0x28] sm:$0xff]
    %v919 = vld [vmem:[#allocation16 + $0x30] sm:$0xff]
    %v920 = vld [vmem:[#allocation16 + $0x38] sm:$0xff]
    %v921 = vld [vmem:[#allocation16 + $0x40] sm:$0xff]
    %v922 = vld [vmem:[#allocation16 + $0x48] sm:$0xff]
    %v923 = vld [vmem:[#allocation16 + $0x50] sm:$0xff]
    %v924 = vld [vmem:[#allocation16 + $0x58] sm:$0xff]
    %v925 = vld [vmem:[#allocation16 + $0x60] sm:$0xff]
    %v926 = vld [vmem:[#allocation16 + $0x68] sm:$0xff]
    %v927 = vld [vmem:[#allocation16 + $0x70] sm:$0xff]
    %v928 = vld [vmem:[#allocation16 + $0x78] sm:$0xff]
    %v929 = vld [vmem:[#allocation16 + $0x80] sm:$0xff]
    %v930 = vld [vmem:[#allocation16 + $0x88] sm:$0xff]
    %v931 = vld [vmem:[#allocation16 + $0x90] sm:$0xff]
    %v932 = vld [vmem:[#allocation16 + $0x98] sm:$0xff]
    %v933 = vld [vmem:[#allocation16 + $0xa0] sm:$0xff]
    %v934 = vld [vmem:[#allocation16 + $0xa8] sm:$0xff]
    %v935 = vld [vmem:[#allocation16 + $0xb0] sm:$0xff]
    %v936 = vld [vmem:[#allocation16 + $0xb8] sm:$0xff]
    %v937 = vld [vmem:[#allocation16 + $0xc0] sm:$0xff]
    %v938 = vld [vmem:[#allocation16 + $0xc8] sm:$0xff]
    %v939 = vld [vmem:[#allocation16 + $0xd0] sm:$0xff]
    %v940 = vld [vmem:[#allocation16 + $0xd8] sm:$0xff]
    %v941 = vld [vmem:[#allocation16 + $0xe0] sm:$0xff]
    %v942 = vld [vmem:[#allocation16 + $0xe8] sm:$0xff]
    %v943 = vld [vmem:[#allocation16 + $0xf0] sm:$0xff]
    %v944 = vld [vmem:[#allocation16 + $0xf8] sm:$0xff]
    %v945 = vld [vmem:[%s16] sm:$0x1]
    %v947 = vlaneseq
    %v948 = vshrl.u32 %v947, 7
    %v949 = vsub.s32 0, %v948
    %v950 = vrot.slane %v945, %v949
    %952 = vmatprep.subr.mxu0 0.0
    %953 = vmatpush1.msra.mxu0 %v928
    %954 = vmatprep.subr.mxu0 0.0
    %955 = vmatpush1.msra.mxu0 %v927
    %956 = vmatprep.subr.mxu0 0.0
    %957 = vmatpush1.msra.mxu0 %v926
    %958 = vmatprep.subr.mxu0 0.0
    %959 = vmatpush1.msra.mxu0 %v925
    %960 = vmatprep.subr.mxu0 0.0
    %961 = vmatpush1.msra.mxu0 %v924
    %962 = vmatprep.subr.mxu0 0.0
    %963 = vmatpush1.msra.mxu0 %v923
    %964 = vmatprep.subr.mxu0 0.0
    %965 = vmatpush1.msra.mxu0 %v922
    %966 = vmatprep.subr.mxu0 0.0
    %967 = vmatpush1.msra.mxu0 %v921
    %968 = vmatprep.subr.mxu0 0.0
    %969 = vmatpush1.msra.mxu0 %v920
    %970 = vmatprep.subr.mxu0 0.0
    %971 = vmatpush1.msra.mxu0 %v919
    %972 = vmatprep.subr.mxu0 0.0
    %973 = vmatpush1.msra.mxu0 %v918
    %974 = vmatprep.subr.mxu0 0.0
    %975 = vmatpush1.msra.mxu0 %v917
    %976 = vmatprep.subr.mxu0 0.0
    %977 = vmatpush1.msra.mxu0 %v916
    %978 = vmatprep.subr.mxu0 0.0
    %979 = vmatpush1.msra.mxu0 %v915
    %980 = vmatprep.subr.mxu0 0.0
    %981 = vmatpush1.msra.mxu0 %v914
    %982 = vmatprep.subr.mxu0 0.0
    %983 = vmatpush1.msra.mxu0 %v913
    %984 = vmatprep.subr.mxu0 0.0
    %985 = vmatpush2.msra.mxu0 %v944
    %986 = vmatprep.subr.mxu0 0.0
    %987 = vmatpush2.msra.mxu0 %v943
    %988 = vmatprep.subr.mxu0 0.0
    %989 = vmatpush2.msra.mxu0 %v942
    %990 = vmatprep.subr.mxu0 0.0
    %991 = vmatpush2.msra.mxu0 %v941
    %992 = vmatprep.subr.mxu0 0.0
    %993 = vmatpush2.msra.mxu0 %v940
    %994 = vmatprep.subr.mxu0 0.0
    %995 = vmatpush2.msra.mxu0 %v939
    %996 = vmatprep.subr.mxu0 0.0
    %997 = vmatpush2.msra.mxu0 %v938
    %998 = vmatprep.subr.mxu0 0.0
    %999 = vmatpush2.msra.mxu0 %v937
    %1000 = vmatprep.subr.mxu0 0.0
    %1001 = vmatpush2.msra.mxu0 %v936
    %1002 = vmatprep.subr.mxu0 0.0
    %1003 = vmatpush2.msra.mxu0 %v935
    %1004 = vmatprep.subr.mxu0 0.0
    %1005 = vmatpush2.msra.mxu0 %v934
    %1006 = vmatprep.subr.mxu0 0.0
    %1007 = vmatpush2.msra.mxu0 %v933
    %1008 = vmatprep.subr.mxu0 0.0
    %1009 = vmatpush2.msra.mxu0 %v932
    %1010 = vmatprep.subr.mxu0 0.0
    %1011 = vmatpush2.msra.mxu0 %v931
    %1012 = vmatprep.subr.mxu0 0.0
    %1013 = vmatpush2.msra.mxu0 %v930
    %1014 = vmatprep.subr.mxu0 0.0
    %1015 = vmatpush2.msra.mxu0 %v929
    %1016 = vmatprep.mubr.f32.mxu0 %v912
    %1017 = vmatmul.mubr.f32.gmra.mxu0 %v911
    %v1018 = vpop.f32.mrf.mxu0
    %v1019 = vadd.f32 %v950, %v1018
    %v1020 = vpop.f32.mrf.mxu0
    %1021 = vdwg.mxu0
    %1022 = vst [vmem:[#allocation17] sm:$0xff] %v1019
    // Predicated region
    $region106: #{tpu_custom_call.1} parent=1 // pred_check
      _
    $region107: #{tpu_custom_call.1} parent=1 // pred_check_branch
      %1024 = sbr.rel (0) target = $region109
    $region108: #{tpu_custom_call.1} parent=1 // pred_region
      %s1026 = ssub.s32 128, 128
      %1027 = vsyncadd [#allocation4], %s1026
      %s1029 = sshll.u32 [#allocation17], 4
      %s1030 = int_to_ptr.vmem [resolvable:$true] %s1029
      %1032 = dma.vmem_to_hbm [thread:$0]  %s1030, 128, %s17, [#allocation4]
    $region109: #{tpu_custom_call.1} parent=1 // pred_fallthru
      _
    // Predicated region
    $region110: #{tpu_custom_call.1} parent=1 // pred_check
      _
    $region111: #{tpu_custom_call.1} parent=1 // pred_check_branch
      %1034 = sbr.rel (0) target = $region113
    $region112: #{tpu_custom_call.1} parent=1 // pred_region
      %1035 = dma.done [#allocation4], 128
    $region113: #{tpu_custom_call.1} parent=1 // pred_fallthru
      _
    %1036 = vsyncpa [#allocation3], 1
    %1037 = vsyncpa [#allocation6], 1
    %1038 = vsyncpa [#allocation9], 1
    %1039 = vsyncpa [#allocation12], 1
    %1040 = vsyncpa [#allocation15], 1
    %1041 = vsyncpa [#allocation4], 1

// kernel: tpu_custom_call.1
$region0: #{tpu_custom_call.1}
  #allocation0 [shape = 'u32[]', space=smem, size = 0x4, offset = 0x4, fixed_abs, tag = 'smem constant byte address 0x4 - core index']
  #allocation1 [shape = 'u32[144,128]{1,0:T(1,128)}', space=vmem, size = 0x12000, scoped, tag = 'internal scratch']
  %s0 = inlined_call_operand.hbm [shape: f32[8,128], index: 0, kind: input, shape index: {}]
  %s1 = inlined_call_operand.hbm [shape: f32[128,256], index: 1, kind: input, shape index: {}]
  %s2 = inlined_call_operand.vmem [shape: f32[1,256], index: 2, kind: input, shape index: {}]
  %s3 = inlined_call_operand.hbm [shape: f32[256,128], index: 3, kind: input, shape index: {}]
  %s4 = inlined_call_operand.vmem [shape: f32[1,128], index: 4, kind: input, shape index: {}]
  %s5 = inlined_call_operand.hbm [shape: f32[128,128], index: 5, kind: input, shape index: {}]
  %s6 = inlined_call_operand.vmem [shape: f32[1,128], index: 6, kind: input, shape index: {}]
  %s7 = inlined_call_operand.hbm [shape: f32[128,128], index: 7, kind: input, shape index: {}]
  %s8 = inlined_call_operand.vmem [shape: f32[1,128], index: 8, kind: input, shape index: {}]
  %s9 = inlined_call_operand.hbm [shape: f32[128,128], index: 9, kind: input, shape index: {}]
  %s10 = inlined_call_operand.vmem [shape: f32[1,128], index: 10, kind: input, shape index: {}]
  %s11 = inlined_call_operand.hbm [shape: f32[128,128], index: 11, kind: input, shape index: {}]
  %s12 = inlined_call_operand.vmem [shape: f32[1,128], index: 12, kind: input, shape index: {}]
  %s13 = inlined_call_operand.hbm [shape: f32[128,256], index: 13, kind: input, shape index: {}]
  %s14 = inlined_call_operand.vmem [shape: f32[1,256], index: 14, kind: input, shape index: {}]
  %s15 = inlined_call_operand.hbm [shape: f32[256,128], index: 15, kind: input, shape index: {}]
  %s16 = inlined_call_operand.vmem [shape: f32[1,128], index: 16, kind: input, shape index: {}]
  %s17 = inlined_call_operand.hbm [shape: f32[8,128], index: 17, kind: output, shape index: {}]
  %s18 = sld [smem:[#allocation0]]
  $region114: #{tpu_custom_call.1} parent=0
    _
  %s20 = ssub.s32 1, %s18
  %s21 = scalar_select 0, %s20, %s18
  $region1: #{tpu_custom_call.1} parent=0
    #allocation2 [shape = 'u8[4096]{0}', space=vmem, size = 0x1000, scoped, tag = 'input window, operand 0, single buffered']
    #allocation3 [shape = 's32[1]{0}', space=sflag, size = 0x4, scoped, tag = 'scoped memory for tpu_custom_call.1']
    #allocation4 [shape = 's32[1]{0}', space=sflag, size = 0x4, scoped, tag = 'scoped memory for tpu_custom_call.1']
    #allocation5 [shape = 'u8[131072]{0}', space=vmem, size = 0x20000, scoped, tag = 'input window, operand 1, single buffered']
    #allocation6 [shape = 's32[1]{0}', space=sflag, size = 0x4, scoped, tag = 'scoped memory for tpu_custom_call.1']
    #allocation7 [shape = 'u8[131072]{0}', space=vmem, size = 0x20000, scoped, tag = 'input window, operand 3, single buffered']
    #allocation8 [shape = 'u8[65536]{0}', space=vmem, size = 0x10000, scoped, tag = 'input window, operand 5, single buffered']
    #allocation9 [shape = 's32[1]{0}', space=sflag, size = 0x4, scoped, tag = 'scoped memory for tpu_custom_call.1']
    #allocation10 [shape = 'u8[65536]{0}', space=vmem, size = 0x10000, scoped, tag = 'input window, operand 7, single buffered']
    #allocation11 [shape = 'u8[65536]{0}', space=vmem, size = 0x10000, scoped, tag = 'input window, operand 9, single buffered']
    #allocation12 [shape = 's32[1]{0}', space=sflag, size = 0x4, scoped, tag = 'scoped memory for tpu_custom_call.1']
    #allocation13 [shape = 'u8[65536]{0}', space=vmem, size = 0x10000, scoped, tag = 'input window, operand 11, single buffered']
    #allocation14 [shape = 'u8[131072]{0}', space=vmem, size = 0x20000, scoped, tag = 'input window, operand 13, single buffered']
    #allocation15 [shape = 's32[1]{0}', space=sflag, size = 0x4, scoped, tag = 'scoped memory for tpu_custom_call.1']
    #allocation16 [shape = 'u8[131072]{0}', space=vmem, size = 0x20000, scoped, tag = 'input window, operand 15, single buffered']
    #allocation17 [shape = 'u8[4096]{0}', space=vmem, size = 0x1000, scoped, tag = 'output window, operand 0, single buffered']
    %22 = vsyncpa [#allocation3], 0
    %23 = vsyncpa [#allocation6], 0
    %24 = vsyncpa [#allocation9], 0
    %25 = vsyncpa [#allocation12], 0
    %26 = vsyncpa [#allocation15], 0
    %27 = vsyncpa [#allocation4], 0
    // Predicated region
    $region2: #{tpu_custom_call.1} parent=1 // pred_check
      _
    $region3: #{tpu_custom_call.1} parent=1 // pred_check_branch
      %29 = sbr.rel (0) target = $region5
    $region4: #{tpu_custom_call.1} parent=1 // pred_region
      %s31 = ssub.s32 128, 128
      %32 = vsyncadd [#allocation3], %s31
      %s34 = sshll.u32 [#allocation2], 4
      %s35 = int_to_ptr.vmem [resolvable:$true] %s34
      %37 = dma.hbm_to_vmem [thread:$0]  %s0, 128, %s35, [#allocation3]
    $region5: #{tpu_custom_call.1} parent=1 // pred_fallthru
      _
    // Predicated region
    $region6: #{tpu_custom_call.1} parent=1 // pred_check
      _
    $region7: #{tpu_custom_call.1} parent=1 // pred_check_branch
      %39 = sbr.rel (0) target = $region9
    $region8: #{tpu_custom_call.1} parent=1 // pred_region
      %s41 = ssub.s32 4096, 4096
      %42 = vsyncadd [#allocation6], %s41
      %s43 = sshll.u32 [#allocation5], 4
      %s44 = int_to_ptr.vmem [resolvable:$true] %s43
      %49 = dma.hbm_to_vmem [thread:$0]  %s1, 4096, %s44, [#allocation6], 256, 256, 16
    $region9: #{tpu_custom_call.1} parent=1 // pred_fallthru
      _
    // Predicated region
    $region10: #{tpu_custom_call.1} parent=1 // pred_check
      _
    $region11: #{tpu_custom_call.1} parent=1 // pred_check_branch
      %51 = sbr.rel (0) target = $region13
    $region12: #{tpu_custom_call.1} parent=1 // pred_region
      _
    $region13: #{tpu_custom_call.1} parent=1 // pred_fallthru
      _
    // Predicated region
    $region14: #{tpu_custom_call.1} parent=1 // pred_check
      _
    $region15: #{tpu_custom_call.1} parent=1 // pred_check_branch
      %53 = sbr.rel (0) target = $region17
    $region16: #{tpu_custom_call.1} parent=1 // pred_region
      %s55 = ssub.s32 4096, 4096
      %56 = vsyncadd [#allocation6], %s55
      %s57 = sshll.u32 [#allocation7], 4
      %s58 = int_to_ptr.vmem [resolvable:$true] %s57
      %63 = dma.hbm_to_vmem [thread:$0]  %s3, 4096, %s58, [#allocation6], 128, 128, 8
    $region17: #{tpu_custom_call.1} parent=1 // pred_fallthru
      _
    // Predicated region
    $region18: #{tpu_custom_call.1} parent=1 // pred_check
      _
    $region19: #{tpu_custom_call.1} parent=1 // pred_check_branch
      %65 = sbr.rel (0) target = $region21
    $region20: #{tpu_custom_call.1} parent=1 // pred_region
      _
    $region21: #{tpu_custom_call.1} parent=1 // pred_fallthru
      _
    // Predicated region
    $region22: #{tpu_custom_call.1} parent=1 // pred_check
      _
    $region23: #{tpu_custom_call.1} parent=1 // pred_check_branch
      %67 = sbr.rel (0) target = $region25
    $region24: #{tpu_custom_call.1} parent=1 // pred_region
      %s69 = ssub.s32 2048, 2048
      %70 = vsyncadd [#allocation9], %s69
      %s71 = sshll.u32 [#allocation8], 4
      %s72 = int_to_ptr.vmem [resolvable:$true] %s71
      %77 = dma.hbm_to_vmem [thread:$0]  %s5, 2048, %s72, [#allocation9], 128, 128, 8
    $region25: #{tpu_custom_call.1} parent=1 // pred_fallthru
      _
    // Predicated region
    $region26: #{tpu_custom_call.1} parent=1 // pred_check
      _
    $region27: #{tpu_custom_call.1} parent=1 // pred_check_branch
      %79 = sbr.rel (0) target = $region29
    $region28: #{tpu_custom_call.1} parent=1 // pred_region
      _
    $region29: #{tpu_custom_call.1} parent=1 // pred_fallthru
      _
    // Predicated region
    $region30: #{tpu_custom_call.1} parent=1 // pred_check
      _
    $region31: #{tpu_custom_call.1} parent=1 // pred_check_branch
      %81 = sbr.rel (0) target = $region33
    $region32: #{tpu_custom_call.1} parent=1 // pred_region
      %s83 = ssub.s32 2048, 2048
      %84 = vsyncadd [#allocation9], %s83
      %s85 = sshll.u32 [#allocation10], 4
      %s86 = int_to_ptr.vmem [resolvable:$true] %s85
      %91 = dma.hbm_to_vmem [thread:$0]  %s7, 2048, %s86, [#allocation9], 128, 128, 8
    $region33: #{tpu_custom_call.1} parent=1 // pred_fallthru
      _
    // Predicated region
    $region34: #{tpu_custom_call.1} parent=1 // pred_check
      _
    $region35: #{tpu_custom_call.1} parent=1 // pred_check_branch
      %93 = sbr.rel (0) target = $region37
    $region36: #{tpu_custom_call.1} parent=1 // pred_region
      _
    $region37: #{tpu_custom_call.1} parent=1 // pred_fallthru
      _
    // Predicated region
    $region38: #{tpu_custom_call.1} parent=1 // pred_check
      _
    $region39: #{tpu_custom_call.1} parent=1 // pred_check_branch
      %95 = sbr.rel (0) target = $region41
    $region40: #{tpu_custom_call.1} parent=1 // pred_region
      %s97 = ssub.s32 2048, 2048
      %98 = vsyncadd [#allocation12], %s97
      %s99 = sshll.u32 [#allocation11], 4
      %s100 = int_to_ptr.vmem [resolvable:$true] %s99
      %105 = dma.hbm_to_vmem [thread:$0]  %s9, 2048, %s100, [#allocation12], 128, 128, 8
    $region41: #{tpu_custom_call.1} parent=1 // pred_fallthru
      _
    // Predicated region
    $region42: #{tpu_custom_call.1} parent=1 // pred_check
      _
    $region43: #{tpu_custom_call.1} parent=1 // pred_check_branch
      %107 = sbr.rel (0) target = $region45
    $region44: #{tpu_custom_call.1} parent=1 // pred_region
      _
    $region45: #{tpu_custom_call.1} parent=1 // pred_fallthru
      _
    // Predicated region
    $region46: #{tpu_custom_call.1} parent=1 // pred_check
      _
    $region47: #{tpu_custom_call.1} parent=1 // pred_check_branch
      %109 = sbr.rel (0) target = $region49
    $region48: #{tpu_custom_call.1} parent=1 // pred_region
      %s111 = ssub.s32 2048, 2048
      %112 = vsyncadd [#allocation12], %s111
      %s113 = sshll.u32 [#allocation13], 4
      %s114 = int_to_ptr.vmem [resolvable:$true] %s113
      %119 = dma.hbm_to_vmem [thread:$0]  %s11, 2048, %s114, [#allocation12], 128, 128, 8
    $region49: #{tpu_custom_call.1} parent=1 // pred_fallthru
      _
    // Predicated region
    $region50: #{tpu_custom_call.1} parent=1 // pred_check
      _
    $region51: #{tpu_custom_call.1} parent=1 // pred_check_branch
      %121 = sbr.rel (0) target = $region53
    $region52: #{tpu_custom_call.1} parent=1 // pred_region
      _
    $region53: #{tpu_custom_call.1} parent=1 // pred_fallthru
      _
    // Predicated region
    $region54: #{tpu_custom_call.1} parent=1 // pred_check
      _
    $region55: #{tpu_custom_call.1} parent=1 // pred_check_branch
      %123 = sbr.rel (0) target = $region57
    $region56: #{tpu_custom_call.1} parent=1 // pred_region
      %s125 = ssub.s32 4096, 4096
      %126 = vsyncadd [#allocation15], %s125
      %s127 = sshll.u32 [#allocation14], 4
      %s128 = int_to_ptr.vmem [resolvable:$true] %s127
      %133 = dma.hbm_to_vmem [thread:$0]  %s13, 4096, %s128, [#allocation15], 256, 256, 16
    $region57: #{tpu_custom_call.1} parent=1 // pred_fallthru
      _
    // Predicated region
    $region58: #{tpu_custom_call.1} parent=1 // pred_check
      _
    $region59: #{tpu_custom_call.1} parent=1 // pred_check_branch
      %135 = sbr.rel (0) target = $region61
    $region60: #{tpu_custom_call.1} parent=1 // pred_region
      _
    $region61: #{tpu_custom_call.1} parent=1 // pred_fallthru
      _
    // Predicated region
    $region62: #{tpu_custom_call.1} parent=1 // pred_check
      _
    $region63: #{tpu_custom_call.1} parent=1 // pred_check_branch
      %137 = sbr.rel (0) target = $region65
    $region64: #{tpu_custom_call.1} parent=1 // pred_region
      %s139 = ssub.s32 4096, 4096
      %140 = vsyncadd [#allocation15], %s139
      %s141 = sshll.u32 [#allocation16], 4
      %s142 = int_to_ptr.vmem [resolvable:$true] %s141
      %147 = dma.hbm_to_vmem [thread:$0]  %s15, 4096, %s142, [#allocation15], 128, 128, 8
    $region65: #{tpu_custom_call.1} parent=1 // pred_fallthru
      _
    // Predicated region
    $region66: #{tpu_custom_call.1} parent=1 // pred_check
      _
    $region67: #{tpu_custom_call.1} parent=1 // pred_check_branch
      %149 = sbr.rel (0) target = $region69
    $region68: #{tpu_custom_call.1} parent=1 // pred_region
      _
    $region69: #{tpu_custom_call.1} parent=1 // pred_fallthru
      _
    // Predicated region
    $region70: #{tpu_custom_call.1} parent=1 // pred_check
      _
    $region71: #{tpu_custom_call.1} parent=1 // pred_check_branch
      %151 = sbr.rel (0) target = $region73
    $region72: #{tpu_custom_call.1} parent=1 // pred_region
      %152 = dma.done [#allocation3], 128
    $region73: #{tpu_custom_call.1} parent=1 // pred_fallthru
      _
    // Predicated region
    $region74: #{tpu_custom_call.1} parent=1 // pred_check
      _
    $region75: #{tpu_custom_call.1} parent=1 // pred_check_branch
      %154 = sbr.rel (0) target = $region77
    $region76: #{tpu_custom_call.1} parent=1 // pred_region
      %155 = dma.done [#allocation6], 4096
    $region77: #{tpu_custom_call.1} parent=1 // pred_fallthru
      _
    // Predicated region
    $region78: #{tpu_custom_call.1} parent=1 // pred_check
      _
    $region79: #{tpu_custom_call.1} parent=1 // pred_check_branch
      %157 = sbr.rel (0) target = $region81
    $region80: #{tpu_custom_call.1} parent=1 // pred_region
      %158 = dma.done [#allocation6], 4096
    $region81: #{tpu_custom_call.1} parent=1 // pred_fallthru
      _
    // Predicated region
    $region82: #{tpu_custom_call.1} parent=1 // pred_check
      _
    $region83: #{tpu_custom_call.1} parent=1 // pred_check_branch
      %160 = sbr.rel (0) target = $region85
    $region84: #{tpu_custom_call.1} parent=1 // pred_region
      %161 = dma.done [#allocation9], 2048
    $region85: #{tpu_custom_call.1} parent=1 // pred_fallthru
      _
    // Predicated region
    $region86: #{tpu_custom_call.1} parent=1 // pred_check
      _
    $region87: #{tpu_custom_call.1} parent=1 // pred_check_branch
      %163 = sbr.rel (0) target = $region89
    $region88: #{tpu_custom_call.1} parent=1 // pred_region
      %164 = dma.done [#allocation9], 2048
    $region89: #{tpu_custom_call.1} parent=1 // pred_fallthru
      _
    // Predicated region
    $region90: #{tpu_custom_call.1} parent=1 // pred_check
      _
    $region91: #{tpu_custom_call.1} parent=1 // pred_check_branch
      %166 = sbr.rel (0) target = $region93
    $region92: #{tpu_custom_call.1} parent=1 // pred_region
      %167 = dma.done [#allocation12], 2048
    $region93: #{tpu_custom_call.1} parent=1 // pred_fallthru
      _
    // Predicated region
    $region94: #{tpu_custom_call.1} parent=1 // pred_check
      _
    $region95: #{tpu_custom_call.1} parent=1 // pred_check_branch
      %169 = sbr.rel (0) target = $region97
    $region96: #{tpu_custom_call.1} parent=1 // pred_region
      %170 = dma.done [#allocation12], 2048
    $region97: #{tpu_custom_call.1} parent=1 // pred_fallthru
      _
    // Predicated region
    $region98: #{tpu_custom_call.1} parent=1 // pred_check
      _
    $region99: #{tpu_custom_call.1} parent=1 // pred_check_branch
      %172 = sbr.rel (0) target = $region101
    $region100: #{tpu_custom_call.1} parent=1 // pred_region
      %173 = dma.done [#allocation15], 4096
    $region101: #{tpu_custom_call.1} parent=1 // pred_fallthru
      _
    // Predicated region
    $region102: #{tpu_custom_call.1} parent=1 // pred_check
      _
    $region103: #{tpu_custom_call.1} parent=1 // pred_check_branch
      %175 = sbr.rel (0) target = $region105
    $region104: #{tpu_custom_call.1} parent=1 // pred_region
      %176 = dma.done [#allocation15], 4096
    $region105: #{tpu_custom_call.1} parent=1 // pred_fallthru
      _
    %v177 = vld [vmem:[#allocation2] sm:$0xff]
    %v178 = vld [vmem:[#allocation5] sm:$0xff]
    %v179 = vld [vmem:[#allocation5 + $0x8] sm:$0xff]
    %v180 = vld [vmem:[#allocation5 + $0x10] sm:$0xff]
    %v181 = vld [vmem:[#allocation5 + $0x18] sm:$0xff]
    %v182 = vld [vmem:[#allocation5 + $0x20] sm:$0xff]
    %v183 = vld [vmem:[#allocation5 + $0x28] sm:$0xff]
    %v184 = vld [vmem:[#allocation5 + $0x30] sm:$0xff]
    %v185 = vld [vmem:[#allocation5 + $0x38] sm:$0xff]
    %v186 = vld [vmem:[#allocation5 + $0x40] sm:$0xff]
    %v187 = vld [vmem:[#allocation5 + $0x48] sm:$0xff]
    %v188 = vld [vmem:[#allocation5 + $0x50] sm:$0xff]
    %v189 = vld [vmem:[#allocation5 + $0x58] sm:$0xff]
    %v190 = vld [vmem:[#allocation5 + $0x60] sm:$0xff]
    %v191 = vld [vmem:[#allocation5 + $0x68] sm:$0xff]
    %v192 = vld [vmem:[#allocation5 + $0x70] sm:$0xff]
    %v193 = vld [vmem:[#allocation5 + $0x78] sm:$0xff]
    %v194 = vld [vmem:[#allocation5 + $0x80] sm:$0xff]
    %v195 = vld [vmem:[#allocation5 + $0x88] sm:$0xff]
    %v196 = vld [vmem:[#allocation5 + $0x90] sm:$0xff]
    %v197 = vld [vmem:[#allocation5 + $0x98] sm:$0xff]
    %v198 = vld [vmem:[#allocation5 + $0xa0] sm:$0xff]
    %v199 = vld [vmem:[#allocation5 + $0xa8] sm:$0xff]
    %v200 = vld [vmem:[#allocation5 + $0xb0] sm:$0xff]
    %v201 = vld [vmem:[#allocation5 + $0xb8] sm:$0xff]
    %v202 = vld [vmem:[#allocation5 + $0xc0] sm:$0xff]
    %v203 = vld [vmem:[#allocation5 + $0xc8] sm:$0xff]
    %v204 = vld [vmem:[#allocation5 + $0xd0] sm:$0xff]
    %v205 = vld [vmem:[#allocation5 + $0xd8] sm:$0xff]
    %v206 = vld [vmem:[#allocation5 + $0xe0] sm:$0xff]
    %v207 = vld [vmem:[#allocation5 + $0xe8] sm:$0xff]
    %v208 = vld [vmem:[#allocation5 + $0xf0] sm:$0xff]
    %v209 = vld [vmem:[#allocation5 + $0xf8] sm:$0xff]
    %v210 = vld [vmem:[%s2] sm:$0x3]
    %v212 = vlaneseq
    %v213 = vshrl.u32 %v212, 7
    %v214 = vsub.s32 0, %v213
    %v215 = vrot.slane %v210, %v214
    %v216 = vlaneseq
    %v217 = vshrl.u32 %v216, 7
    %v218 = vsub.s32 1, %v217
    %v219 = vrot.slane %v210, %v218
    %222 = vmatprep.subr.mxu0 %v209
    %223 = vmatpush1.msra.mxu0 %v208
    %224 = vmatprep.subr.mxu0 %v207
    %225 = vmatpush1.msra.mxu0 %v206
    %226 = vmatprep.subr.mxu0 %v205
    %227 = vmatpush1.msra.mxu0 %v204
    %228 = vmatprep.subr.mxu0 %v203
    %229 = vmatpush1.msra.mxu0 %v202
    %230 = vmatprep.subr.mxu0 %v201
    %231 = vmatpush1.msra.mxu0 %v200
    %232 = vmatprep.subr.mxu0 %v199
    %233 = vmatpush1.msra.mxu0 %v198
    %234 = vmatprep.subr.mxu0 %v197
    %235 = vmatpush1.msra.mxu0 %v196
    %236 = vmatprep.subr.mxu0 %v195
    %237 = vmatpush1.msra.mxu0 %v194
    %238 = vmatprep.subr.mxu0 %v193
    %239 = vmatpush1.msra.mxu0 %v192
    %240 = vmatprep.subr.mxu0 %v191
    %241 = vmatpush1.msra.mxu0 %v190
    %242 = vmatprep.subr.mxu0 %v189
    %243 = vmatpush1.msra.mxu0 %v188
    %244 = vmatprep.subr.mxu0 %v187
    %245 = vmatpush1.msra.mxu0 %v186
    %246 = vmatprep.subr.mxu0 %v185
    %247 = vmatpush1.msra.mxu0 %v184
    %248 = vmatprep.subr.mxu0 %v183
    %249 = vmatpush1.msra.mxu0 %v182
    %250 = vmatprep.subr.mxu0 %v181
    %251 = vmatpush1.msra.mxu0 %v180
    %252 = vmatprep.subr.mxu0 %v179
    %253 = vmatpush1.msra.mxu0 %v178
    %254 = vmatprep.subr.mxu0 0.0
    %255 = vmatpush2.msra.mxu0 0.0
    %256 = vmatprep.subr.mxu0 0.0
    %257 = vmatpush2.msra.mxu0 0.0
    %258 = vmatprep.subr.mxu0 0.0
    %259 = vmatpush2.msra.mxu0 0.0
    %260 = vmatprep.subr.mxu0 0.0
    %261 = vmatpush2.msra.mxu0 0.0
    %262 = vmatprep.subr.mxu0 0.0
    %263 = vmatpush2.msra.mxu0 0.0
    %264 = vmatprep.subr.mxu0 0.0
    %265 = vmatpush2.msra.mxu0 0.0
    %266 = vmatprep.subr.mxu0 0.0
    %267 = vmatpush2.msra.mxu0 0.0
    %268 = vmatprep.subr.mxu0 0.0
    %269 = vmatpush2.msra.mxu0 0.0
    %270 = vmatprep.subr.mxu0 0.0
    %271 = vmatpush2.msra.mxu0 0.0
    %272 = vmatprep.subr.mxu0 0.0
    %273 = vmatpush2.msra.mxu0 0.0
    %274 = vmatprep.subr.mxu0 0.0
    %275 = vmatpush2.msra.mxu0 0.0
    %276 = vmatprep.subr.mxu0 0.0
    %277 = vmatpush2.msra.mxu0 0.0
    %278 = vmatprep.subr.mxu0 0.0
    %279 = vmatpush2.msra.mxu0 0.0
    %280 = vmatprep.subr.mxu0 0.0
    %281 = vmatpush2.msra.mxu0 0.0
    %282 = vmatprep.subr.mxu0 0.0
    %283 = vmatpush2.msra.mxu0 0.0
    %284 = vmatprep.subr.mxu0 0.0
    %285 = vmatpush2.msra.mxu0 0.0
    %286 = vmatprep.mubr.f32.mxu0 0.0
    %287 = vmatmul.mubr.f32.gmra.mxu0 %v177
    %v288 = vpop.f32.mrf.mxu0
    %v289 = vadd.f32 %v215, %v288
    %v290 = vpop.f32.mrf.mxu0
    %v291 = vadd.f32 %v219, %v290
    %292 = vdwg.mxu0
    %vm293 = vcmp.gt.f32.partialorder %v289, 0.0
    %vm294 = vcmp.gt.f32.partialorder %v291, 0.0
    %v295 = vmul.f32 %v289, 0.01
    %v296 = vmul.f32 %v291, 0.01
    %v297 = vsel %vm293, %v289, %v295
    %v298 = vsel %vm294, %v291, %v296
    %v299 = vld [vmem:[#allocation7] sm:$0xff]
    %v300 = vld [vmem:[#allocation7 + $0x8] sm:$0xff]
    %v301 = vld [vmem:[#allocation7 + $0x10] sm:$0xff]
    %v302 = vld [vmem:[#allocation7 + $0x18] sm:$0xff]
    %v303 = vld [vmem:[#allocation7 + $0x20] sm:$0xff]
    %v304 = vld [vmem:[#allocation7 + $0x28] sm:$0xff]
    %v305 = vld [vmem:[#allocation7 + $0x30] sm:$0xff]
    %v306 = vld [vmem:[#allocation7 + $0x38] sm:$0xff]
    %v307 = vld [vmem:[#allocation7 + $0x40] sm:$0xff]
    %v308 = vld [vmem:[#allocation7 + $0x48] sm:$0xff]
    %v309 = vld [vmem:[#allocation7 + $0x50] sm:$0xff]
    %v310 = vld [vmem:[#allocation7 + $0x58] sm:$0xff]
    %v311 = vld [vmem:[#allocation7 + $0x60] sm:$0xff]
    %v312 = vld [vmem:[#allocation7 + $0x68] sm:$0xff]
    %v313 = vld [vmem:[#allocation7 + $0x70] sm:$0xff]
    %v314 = vld [vmem:[#allocation7 + $0x78] sm:$0xff]
    %v315 = vld [vmem:[#allocation7 + $0x80] sm:$0xff]
    %v316 = vld [vmem:[#allocation7 + $0x88] sm:$0xff]
    %v317 = vld [vmem:[#allocation7 + $0x90] sm:$0xff]
    %v318 = vld [vmem:[#allocation7 + $0x98] sm:$0xff]
    %v319 = vld [vmem:[#allocation7 + $0xa0] sm:$0xff]
    %v320 = vld [vmem:[#allocation7 + $0xa8] sm:$0xff]
    %v321 = vld [vmem:[#allocation7 + $0xb0] sm:$0xff]
    %v322 = vld [vmem:[#allocation7 + $0xb8] sm:$0xff]
    %v323 = vld [vmem:[#allocation7 + $0xc0] sm:$0xff]
    %v324 = vld [vmem:[#allocation7 + $0xc8] sm:$0xff]
    %v325 = vld [vmem:[#allocation7 + $0xd0] sm:$0xff]
    %v326 = vld [vmem:[#allocation7 + $0xd8] sm:$0xff]
    %v327 = vld [vmem:[#allocation7 + $0xe0] sm:$0xff]
    %v328 = vld [vmem:[#allocation7 + $0xe8] sm:$0xff]
    %v329 = vld [vmem:[#allocation7 + $0xf0] sm:$0xff]
    %v330 = vld [vmem:[#allocation7 + $0xf8] sm:$0xff]
    %v331 = vld [vmem:[%s4] sm:$0x1]
    %v333 = vlaneseq
    %v334 = vshrl.u32 %v333, 7
    %v335 = vsub.s32 0, %v334
    %v336 = vrot.slane %v331, %v335
    %338 = vmatprep.subr.mxu0 0.0
    %339 = vmatpush1.msra.mxu0 %v314
    %340 = vmatprep.subr.mxu0 0.0
    %341 = vmatpush1.msra.mxu0 %v313
    %342 = vmatprep.subr.mxu0 0.0
    %343 = vmatpush1.msra.mxu0 %v312
    %344 = vmatprep.subr.mxu0 0.0
    %345 = vmatpush1.msra.mxu0 %v311
    %346 = vmatprep.subr.mxu0 0.0
    %347 = vmatpush1.msra.mxu0 %v310
    %348 = vmatprep.subr.mxu0 0.0
    %349 = vmatpush1.msra.mxu0 %v309
    %350 = vmatprep.subr.mxu0 0.0
    %351 = vmatpush1.msra.mxu0 %v308
    %352 = vmatprep.subr.mxu0 0.0
    %353 = vmatpush1.msra.mxu0 %v307
    %354 = vmatprep.subr.mxu0 0.0
    %355 = vmatpush1.msra.mxu0 %v306
    %356 = vmatprep.subr.mxu0 0.0
    %357 = vmatpush1.msra.mxu0 %v305
    %358 = vmatprep.subr.mxu0 0.0
    %359 = vmatpush1.msra.mxu0 %v304
    %360 = vmatprep.subr.mxu0 0.0
    %361 = vmatpush1.msra.mxu0 %v303
    %362 = vmatprep.subr.mxu0 0.0
    %363 = vmatpush1.msra.mxu0 %v302
    %364 = vmatprep.subr.mxu0 0.0
    %365 = vmatpush1.msra.mxu0 %v301
    %366 = vmatprep.subr.mxu0 0.0
    %367 = vmatpush1.msra.mxu0 %v300
    %368 = vmatprep.subr.mxu0 0.0
    %369 = vmatpush1.msra.mxu0 %v299
    %370 = vmatprep.subr.mxu0 0.0
    %371 = vmatpush2.msra.mxu0 %v330
    %372 = vmatprep.subr.mxu0 0.0
    %373 = vmatpush2.msra.mxu0 %v329
    %374 = vmatprep.subr.mxu0 0.0
    %375 = vmatpush2.msra.mxu0 %v328
    %376 = vmatprep.subr.mxu0 0.0
    %377 = vmatpush2.msra.mxu0 %v327
    %378 = vmatprep.subr.mxu0 0.0
    %379 = vmatpush2.msra.mxu0 %v326
    %380 = vmatprep.subr.mxu0 0.0
    %381 = vmatpush2.msra.mxu0 %v325
    %382 = vmatprep.subr.mxu0 0.0
    %383 = vmatpush2.msra.mxu0 %v324
    %384 = vmatprep.subr.mxu0 0.0
    %385 = vmatpush2.msra.mxu0 %v323
    %386 = vmatprep.subr.mxu0 0.0
    %387 = vmatpush2.msra.mxu0 %v322
    %388 = vmatprep.subr.mxu0 0.0
    %389 = vmatpush2.msra.mxu0 %v321
    %390 = vmatprep.subr.mxu0 0.0
    %391 = vmatpush2.msra.mxu0 %v320
    %392 = vmatprep.subr.mxu0 0.0
    %393 = vmatpush2.msra.mxu0 %v319
    %394 = vmatprep.subr.mxu0 0.0
    %395 = vmatpush2.msra.mxu0 %v318
    %396 = vmatprep.subr.mxu0 0.0
    %397 = vmatpush2.msra.mxu0 %v317
    %398 = vmatprep.subr.mxu0 0.0
    %399 = vmatpush2.msra.mxu0 %v316
    %400 = vmatprep.subr.mxu0 0.0
    %401 = vmatpush2.msra.mxu0 %v315
    %402 = vmatprep.mubr.f32.mxu0 %v298
    %403 = vmatmul.mubr.f32.gmra.mxu0 %v297
    %v404 = vpop.f32.mrf.mxu0
    %v405 = vadd.f32 %v336, %v404
    %v406 = vpop.f32.mrf.mxu0
    %407 = vdwg.mxu0
    %vm408 = vcmp.gt.f32.partialorder %v405, 0.0
    %v409 = vmul.f32 %v405, 0.01
    %v410 = vsel %vm408, %v405, %v409
    %v411 = vld [vmem:[#allocation8] sm:$0xff]
    %v412 = vld [vmem:[#allocation8 + $0x8] sm:$0xff]
    %v413 = vld [vmem:[#allocation8 + $0x10] sm:$0xff]
    %v414 = vld [vmem:[#allocation8 + $0x18] sm:$0xff]
    %v415 = vld [vmem:[#allocation8 + $0x20] sm:$0xff]
    %v416 = vld [vmem:[#allocation8 + $0x28] sm:$0xff]
    %v417 = vld [vmem:[#allocation8 + $0x30] sm:$0xff]
    %v418 = vld [vmem:[#allocation8 + $0x38] sm:$0xff]
    %v419 = vld [vmem:[#allocation8 + $0x40] sm:$0xff]
    %v420 = vld [vmem:[#allocation8 + $0x48] sm:$0xff]
    %v421 = vld [vmem:[#allocation8 + $0x50] sm:$0xff]
    %v422 = vld [vmem:[#allocation8 + $0x58] sm:$0xff]
    %v423 = vld [vmem:[#allocation8 + $0x60] sm:$0xff]
    %v424 = vld [vmem:[#allocation8 + $0x68] sm:$0xff]
    %v425 = vld [vmem:[#allocation8 + $0x70] sm:$0xff]
    %v426 = vld [vmem:[#allocation8 + $0x78] sm:$0xff]
    %v427 = vld [vmem:[%s6] sm:$0x1]
    %v429 = vlaneseq
    %v430 = vshrl.u32 %v429, 7
    %v431 = vsub.s32 0, %v430
    %v432 = vrot.slane %v427, %v431
    %434 = vmatprep.subr.mxu0 0.0
    %435 = vmatpush1.msra.mxu0 %v426
    %436 = vmatprep.subr.mxu0 0.0
    %437 = vmatpush1.msra.mxu0 %v425
    %438 = vmatprep.subr.mxu0 0.0
    %439 = vmatpush1.msra.mxu0 %v424
    %440 = vmatprep.subr.mxu0 0.0
    %441 = vmatpush1.msra.mxu0 %v423
    %442 = vmatprep.subr.mxu0 0.0
    %443 = vmatpush1.msra.mxu0 %v422
    %444 = vmatprep.subr.mxu0 0.0
    %445 = vmatpush1.msra.mxu0 %v421
    %446 = vmatprep.subr.mxu0 0.0
    %447 = vmatpush1.msra.mxu0 %v420
    %448 = vmatprep.subr.mxu0 0.0
    %449 = vmatpush1.msra.mxu0 %v419
    %450 = vmatprep.subr.mxu0 0.0
    %451 = vmatpush1.msra.mxu0 %v418
    %452 = vmatprep.subr.mxu0 0.0
    %453 = vmatpush1.msra.mxu0 %v417
    %454 = vmatprep.subr.mxu0 0.0
    %455 = vmatpush1.msra.mxu0 %v416
    %456 = vmatprep.subr.mxu0 0.0
    %457 = vmatpush1.msra.mxu0 %v415
    %458 = vmatprep.subr.mxu0 0.0
    %459 = vmatpush1.msra.mxu0 %v414
    %460 = vmatprep.subr.mxu0 0.0
    %461 = vmatpush1.msra.mxu0 %v413
    %462 = vmatprep.subr.mxu0 0.0
    %463 = vmatpush1.msra.mxu0 %v412
    %464 = vmatprep.subr.mxu0 0.0
    %465 = vmatpush1.msra.mxu0 %v411
    %466 = vmatprep.subr.mxu0 0.0
    %467 = vmatpush2.msra.mxu0 0.0
    %468 = vmatprep.subr.mxu0 0.0
    %469 = vmatpush2.msra.mxu0 0.0
    %470 = vmatprep.subr.mxu0 0.0
    %471 = vmatpush2.msra.mxu0 0.0
    %472 = vmatprep.subr.mxu0 0.0
    %473 = vmatpush2.msra.mxu0 0.0
    %474 = vmatprep.subr.mxu0 0.0
    %475 = vmatpush2.msra.mxu0 0.0
    %476 = vmatprep.subr.mxu0 0.0
    %477 = vmatpush2.msra.mxu0 0.0
    %478 = vmatprep.subr.mxu0 0.0
    %479 = vmatpush2.msra.mxu0 0.0
    %480 = vmatprep.subr.mxu0 0.0
    %481 = vmatpush2.msra.mxu0 0.0
    %482 = vmatprep.subr.mxu0 0.0
    %483 = vmatpush2.msra.mxu0 0.0
    %484 = vmatprep.subr.mxu0 0.0
    %485 = vmatpush2.msra.mxu0 0.0
    %486 = vmatprep.subr.mxu0 0.0
    %487 = vmatpush2.msra.mxu0 0.0
    %488 = vmatprep.subr.mxu0 0.0
    %489 = vmatpush2.msra.mxu0 0.0
    %490 = vmatprep.subr.mxu0 0.0
    %491 = vmatpush2.msra.mxu0 0.0
    %492 = vmatprep.subr.mxu0 0.0
    %493 = vmatpush2.msra.mxu0 0.0
    %494 = vmatprep.subr.mxu0 0.0
    %495 = vmatpush2.msra.mxu0 0.0
    %496 = vmatprep.subr.mxu0 0.0
    %497 = vmatpush2.msra.mxu0 0.0
    %498 = vmatprep.mubr.f32.mxu0 0.0
    %499 = vmatmul.mubr.f32.gmra.mxu0 %v410
    %v500 = vpop.f32.mrf.mxu0
    %v501 = vadd.f32 %v432, %v500
    %v502 = vpop.f32.mrf.mxu0
    %503 = vdwg.mxu0
    %vm504 = vcmp.gt.f32.partialorder %v501, 0.0
    %v505 = vmul.f32 %v501, 0.01
    %v506 = vsel %vm504, %v501, %v505
    %v507 = vld [vmem:[#allocation10] sm:$0xff]
    %v508 = vld [vmem:[#allocation10 + $0x8] sm:$0xff]
    %v509 = vld [vmem:[#allocation10 + $0x10] sm:$0xff]
    %v510 = vld [vmem:[#allocation10 + $0x18] sm:$0xff]
    %v511 = vld [vmem:[#allocation10 + $0x20] sm:$0xff]
    %v512 = vld [vmem:[#allocation10 + $0x28] sm:$0xff]
    %v513 = vld [vmem:[#allocation10 + $0x30] sm:$0xff]
    %v514 = vld [vmem:[#allocation10 + $0x38] sm:$0xff]
    %v515 = vld [vmem:[#allocation10 + $0x40] sm:$0xff]
    %v516 = vld [vmem:[#allocation10 + $0x48] sm:$0xff]
    %v517 = vld [vmem:[#allocation10 + $0x50] sm:$0xff]
    %v518 = vld [vmem:[#allocation10 + $0x58] sm:$0xff]
    %v519 = vld [vmem:[#allocation10 + $0x60] sm:$0xff]
    %v520 = vld [vmem:[#allocation10 + $0x68] sm:$0xff]
    %v521 = vld [vmem:[#allocation10 + $0x70] sm:$0xff]
    %v522 = vld [vmem:[#allocation10 + $0x78] sm:$0xff]
    %v523 = vld [vmem:[%s8] sm:$0x1]
    %v525 = vlaneseq
    %v526 = vshrl.u32 %v525, 7
    %v527 = vsub.s32 0, %v526
    %v528 = vrot.slane %v523, %v527
    %530 = vmatprep.subr.mxu0 0.0
    %531 = vmatpush1.msra.mxu0 %v522
    %532 = vmatprep.subr.mxu0 0.0
    %533 = vmatpush1.msra.mxu0 %v521
    %534 = vmatprep.subr.mxu0 0.0
    %535 = vmatpush1.msra.mxu0 %v520
    %536 = vmatprep.subr.mxu0 0.0
    %537 = vmatpush1.msra.mxu0 %v519
    %538 = vmatprep.subr.mxu0 0.0
    %539 = vmatpush1.msra.mxu0 %v518
    %540 = vmatprep.subr.mxu0 0.0
    %541 = vmatpush1.msra.mxu0 %v517
    %542 = vmatprep.subr.mxu0 0.0
    %543 = vmatpush1.msra.mxu0 %v516
    %544 = vmatprep.subr.mxu0 0.0
    %545 = vmatpush1.msra.mxu0 %v515
    %546 = vmatprep.subr.mxu0 0.0
    %547 = vmatpush1.msra.mxu0 %v514
    %548 = vmatprep.subr.mxu0 0.0
    %549 = vmatpush1.msra.mxu0 %v513
    %550 = vmatprep.subr.mxu0 0.0
    %551 = vmatpush1.msra.mxu0 %v512
    %552 = vmatprep.subr.mxu0 0.0
    %553 = vmatpush1.msra.mxu0 %v511
    %554 = vmatprep.subr.mxu0 0.0
    %555 = vmatpush1.msra.mxu0 %v510
    %556 = vmatprep.subr.mxu0 0.0
    %557 = vmatpush1.msra.mxu0 %v509
    %558 = vmatprep.subr.mxu0 0.0
    %559 = vmatpush1.msra.mxu0 %v508
    %560 = vmatprep.subr.mxu0 0.0
    %561 = vmatpush1.msra.mxu0 %v507
    %562 = vmatprep.subr.mxu0 0.0
    %563 = vmatpush2.msra.mxu0 0.0
    %564 = vmatprep.subr.mxu0 0.0
    %565 = vmatpush2.msra.mxu0 0.0
    %566 = vmatprep.subr.mxu0 0.0
    %567 = vmatpush2.msra.mxu0 0.0
    %568 = vmatprep.subr.mxu0 0.0
    %569 = vmatpush2.msra.mxu0 0.0
    %570 = vmatprep.subr.mxu0 0.0
    %571 = vmatpush2.msra.mxu0 0.0
    %572 = vmatprep.subr.mxu0 0.0
    %573 = vmatpush2.msra.mxu0 0.0
    %574 = vmatprep.subr.mxu0 0.0
    %575 = vmatpush2.msra.mxu0 0.0
    %576 = vmatprep.subr.mxu0 0.0
    %577 = vmatpush2.msra.mxu0 0.0
    %578 = vmatprep.subr.mxu0 0.0
    %579 = vmatpush2.msra.mxu0 0.0
    %580 = vmatprep.subr.mxu0 0.0
    %581 = vmatpush2.msra.mxu0 0.0
    %582 = vmatprep.subr.mxu0 0.0
    %583 = vmatpush2.msra.mxu0 0.0
    %584 = vmatprep.subr.mxu0 0.0
    %585 = vmatpush2.msra.mxu0 0.0
    %586 = vmatprep.subr.mxu0 0.0
    %587 = vmatpush2.msra.mxu0 0.0
    %588 = vmatprep.subr.mxu0 0.0
    %589 = vmatpush2.msra.mxu0 0.0
    %590 = vmatprep.subr.mxu0 0.0
    %591 = vmatpush2.msra.mxu0 0.0
    %592 = vmatprep.subr.mxu0 0.0
    %593 = vmatpush2.msra.mxu0 0.0
    %594 = vmatprep.mubr.f32.mxu0 0.0
    %595 = vmatmul.mubr.f32.gmra.mxu0 %v506
    %v596 = vpop.f32.mrf.mxu0
    %v597 = vadd.f32 %v528, %v596
    %v598 = vpop.f32.mrf.mxu0
    %599 = vdwg.mxu0
    %v600 = vld [vmem:[#allocation11] sm:$0xff]
    %v601 = vld [vmem:[#allocation11 + $0x8] sm:$0xff]
    %v602 = vld [vmem:[#allocation11 + $0x10] sm:$0xff]
    %v603 = vld [vmem:[#allocation11 + $0x18] sm:$0xff]
    %v604 = vld [vmem:[#allocation11 + $0x20] sm:$0xff]
    %v605 = vld [vmem:[#allocation11 + $0x28] sm:$0xff]
    %v606 = vld [vmem:[#allocation11 + $0x30] sm:$0xff]
    %v607 = vld [vmem:[#allocation11 + $0x38] sm:$0xff]
    %v608 = vld [vmem:[#allocation11 + $0x40] sm:$0xff]
    %v609 = vld [vmem:[#allocation11 + $0x48] sm:$0xff]
    %v610 = vld [vmem:[#allocation11 + $0x50] sm:$0xff]
    %v611 = vld [vmem:[#allocation11 + $0x58] sm:$0xff]
    %v612 = vld [vmem:[#allocation11 + $0x60] sm:$0xff]
    %v613 = vld [vmem:[#allocation11 + $0x68] sm:$0xff]
    %v614 = vld [vmem:[#allocation11 + $0x70] sm:$0xff]
    %v615 = vld [vmem:[#allocation11 + $0x78] sm:$0xff]
    %v616 = vld [vmem:[%s10] sm:$0x1]
    %v618 = vlaneseq
    %v619 = vshrl.u32 %v618, 7
    %v620 = vsub.s32 0, %v619
    %v621 = vrot.slane %v616, %v620
    %623 = vmatprep.subr.mxu0 0.0
    %624 = vmatpush1.msra.mxu0 %v615
    %625 = vmatprep.subr.mxu0 0.0
    %626 = vmatpush1.msra.mxu0 %v614
    %627 = vmatprep.subr.mxu0 0.0
    %628 = vmatpush1.msra.mxu0 %v613
    %629 = vmatprep.subr.mxu0 0.0
    %630 = vmatpush1.msra.mxu0 %v612
    %631 = vmatprep.subr.mxu0 0.0
    %632 = vmatpush1.msra.mxu0 %v611
    %633 = vmatprep.subr.mxu0 0.0
    %634 = vmatpush1.msra.mxu0 %v610
    %635 = vmatprep.subr.mxu0 0.0
    %636 = vmatpush1.msra.mxu0 %v609
    %637 = vmatprep.subr.mxu0 0.0
    %638 = vmatpush1.msra.mxu0 %v608
    %639 = vmatprep.subr.mxu0 0.0
    %640 = vmatpush1.msra.mxu0 %v607
    %641 = vmatprep.subr.mxu0 0.0
    %642 = vmatpush1.msra.mxu0 %v606
    %643 = vmatprep.subr.mxu0 0.0
    %644 = vmatpush1.msra.mxu0 %v605
    %645 = vmatprep.subr.mxu0 0.0
    %646 = vmatpush1.msra.mxu0 %v604
    %647 = vmatprep.subr.mxu0 0.0
    %648 = vmatpush1.msra.mxu0 %v603
    %649 = vmatprep.subr.mxu0 0.0
    %650 = vmatpush1.msra.mxu0 %v602
    %651 = vmatprep.subr.mxu0 0.0
    %652 = vmatpush1.msra.mxu0 %v601
    %653 = vmatprep.subr.mxu0 0.0
    %654 = vmatpush1.msra.mxu0 %v600
    %655 = vmatprep.subr.mxu0 0.0
    %656 = vmatpush2.msra.mxu0 0.0
    %657 = vmatprep.subr.mxu0 0.0
    %658 = vmatpush2.msra.mxu0 0.0
    %659 = vmatprep.subr.mxu0 0.0
    %660 = vmatpush2.msra.mxu0 0.0
    %661 = vmatprep.subr.mxu0 0.0
    %662 = vmatpush2.msra.mxu0 0.0
    %663 = vmatprep.subr.mxu0 0.0
    %664 = vmatpush2.msra.mxu0 0.0
    %665 = vmatprep.subr.mxu0 0.0
    %666 = vmatpush2.msra.mxu0 0.0
    %667 = vmatprep.subr.mxu0 0.0
    %668 = vmatpush2.msra.mxu0 0.0
    %669 = vmatprep.subr.mxu0 0.0
    %670 = vmatpush2.msra.mxu0 0.0
    %671 = vmatprep.subr.mxu0 0.0
    %672 = vmatpush2.msra.mxu0 0.0
    %673 = vmatprep.subr.mxu0 0.0
    %674 = vmatpush2.msra.mxu0 0.0
    %675 = vmatprep.subr.mxu0 0.0
    %676 = vmatpush2.msra.mxu0 0.0
    %677 = vmatprep.subr.mxu0 0.0
    %678 = vmatpush2.msra.mxu0 0.0
    %679 = vmatprep.subr.mxu0 0.0
    %680 = vmatpush2.msra.mxu0 0.0
    %681 = vmatprep.subr.mxu0 0.0
    %682 = vmatpush2.msra.mxu0 0.0
    %683 = vmatprep.subr.mxu0 0.0
    %684 = vmatpush2.msra.mxu0 0.0
    %685 = vmatprep.subr.mxu0 0.0
    %686 = vmatpush2.msra.mxu0 0.0
    %687 = vmatprep.mubr.f32.mxu0 0.0
    %688 = vmatmul.mubr.f32.gmra.mxu0 %v597
    %v689 = vpop.f32.mrf.mxu0
    %v690 = vadd.f32 %v621, %v689
    %v691 = vpop.f32.mrf.mxu0
    %692 = vdwg.mxu0
    %vm693 = vcmp.gt.f32.partialorder %v690, 0.0
    %v694 = vmul.f32 %v690, 0.01
    %v695 = vsel %vm693, %v690, %v694
    %v696 = vld [vmem:[#allocation13] sm:$0xff]
    %v697 = vld [vmem:[#allocation13 + $0x8] sm:$0xff]
    %v698 = vld [vmem:[#allocation13 + $0x10] sm:$0xff]
    %v699 = vld [vmem:[#allocation13 + $0x18] sm:$0xff]
    %v700 = vld [vmem:[#allocation13 + $0x20] sm:$0xff]
    %v701 = vld [vmem:[#allocation13 + $0x28] sm:$0xff]
    %v702 = vld [vmem:[#allocation13 + $0x30] sm:$0xff]
    %v703 = vld [vmem:[#allocation13 + $0x38] sm:$0xff]
    %v704 = vld [vmem:[#allocation13 + $0x40] sm:$0xff]
    %v705 = vld [vmem:[#allocation13 + $0x48] sm:$0xff]
    %v706 = vld [vmem:[#allocation13 + $0x50] sm:$0xff]
    %v707 = vld [vmem:[#allocation13 + $0x58] sm:$0xff]
    %v708 = vld [vmem:[#allocation13 + $0x60] sm:$0xff]
    %v709 = vld [vmem:[#allocation13 + $0x68] sm:$0xff]
    %v710 = vld [vmem:[#allocation13 + $0x70] sm:$0xff]
    %v711 = vld [vmem:[#allocation13 + $0x78] sm:$0xff]
    %v712 = vld [vmem:[%s12] sm:$0x1]
    %v714 = vlaneseq
    %v715 = vshrl.u32 %v714, 7
    %v716 = vsub.s32 0, %v715
    %v717 = vrot.slane %v712, %v716
    %719 = vmatprep.subr.mxu0 0.0
    %720 = vmatpush1.msra.mxu0 %v711
    %721 = vmatprep.subr.mxu0 0.0
    %722 = vmatpush1.msra.mxu0 %v710
    %723 = vmatprep.subr.mxu0 0.0
    %724 = vmatpush1.msra.mxu0 %v709
    %725 = vmatprep.subr.mxu0 0.0
    %726 = vmatpush1.msra.mxu0 %v708
    %727 = vmatprep.subr.mxu0 0.0
    %728 = vmatpush1.msra.mxu0 %v707
    %729 = vmatprep.subr.mxu0 0.0
    %730 = vmatpush1.msra.mxu0 %v706
    %731 = vmatprep.subr.mxu0 0.0
    %732 = vmatpush1.msra.mxu0 %v705
    %733 = vmatprep.subr.mxu0 0.0
    %734 = vmatpush1.msra.mxu0 %v704
    %735 = vmatprep.subr.mxu0 0.0
    %736 = vmatpush1.msra.mxu0 %v703
    %737 = vmatprep.subr.mxu0 0.0
    %738 = vmatpush1.msra.mxu0 %v702
    %739 = vmatprep.subr.mxu0 0.0
    %740 = vmatpush1.msra.mxu0 %v701
    %741 = vmatprep.subr.mxu0 0.0
    %742 = vmatpush1.msra.mxu0 %v700
    %743 = vmatprep.subr.mxu0 0.0
    %744 = vmatpush1.msra.mxu0 %v699
    %745 = vmatprep.subr.mxu0 0.0
    %746 = vmatpush1.msra.mxu0 %v698
    %747 = vmatprep.subr.mxu0 0.0
    %748 = vmatpush1.msra.mxu0 %v697
    %749 = vmatprep.subr.mxu0 0.0
    %750 = vmatpush1.msra.mxu0 %v696
    %751 = vmatprep.subr.mxu0 0.0
    %752 = vmatpush2.msra.mxu0 0.0
    %753 = vmatprep.subr.mxu0 0.0
    %754 = vmatpush2.msra.mxu0 0.0
    %755 = vmatprep.subr.mxu0 0.0
    %756 = vmatpush2.msra.mxu0 0.0
    %757 = vmatprep.subr.mxu0 0.0
    %758 = vmatpush2.msra.mxu0 0.0
    %759 = vmatprep.subr.mxu0 0.0
    %760 = vmatpush2.msra.mxu0 0.0
    %761 = vmatprep.subr.mxu0 0.0
    %762 = vmatpush2.msra.mxu0 0.0
    %763 = vmatprep.subr.mxu0 0.0
    %764 = vmatpush2.msra.mxu0 0.0
    %765 = vmatprep.subr.mxu0 0.0
    %766 = vmatpush2.msra.mxu0 0.0
    %767 = vmatprep.subr.mxu0 0.0
    %768 = vmatpush2.msra.mxu0 0.0
    %769 = vmatprep.subr.mxu0 0.0
    %770 = vmatpush2.msra.mxu0 0.0
    %771 = vmatprep.subr.mxu0 0.0
    %772 = vmatpush2.msra.mxu0 0.0
    %773 = vmatprep.subr.mxu0 0.0
    %774 = vmatpush2.msra.mxu0 0.0
    %775 = vmatprep.subr.mxu0 0.0
    %776 = vmatpush2.msra.mxu0 0.0
    %777 = vmatprep.subr.mxu0 0.0
    %778 = vmatpush2.msra.mxu0 0.0
    %779 = vmatprep.subr.mxu0 0.0
    %780 = vmatpush2.msra.mxu0 0.0
    %781 = vmatprep.subr.mxu0 0.0
    %782 = vmatpush2.msra.mxu0 0.0
    %783 = vmatprep.mubr.f32.mxu0 0.0
    %784 = vmatmul.mubr.f32.gmra.mxu0 %v695
    %v785 = vpop.f32.mrf.mxu0
    %v786 = vadd.f32 %v717, %v785
    %v787 = vpop.f32.mrf.mxu0
    %788 = vdwg.mxu0
    %vm789 = vcmp.gt.f32.partialorder %v786, 0.0
    %v790 = vmul.f32 %v786, 0.01
    %v791 = vsel %vm789, %v786, %v790
    %v792 = vld [vmem:[#allocation14] sm:$0xff]
    %v793 = vld [vmem:[#allocation14 + $0x8] sm:$0xff]
    %v794 = vld [vmem:[#allocation14 + $0x10] sm:$0xff]
    %v795 = vld [vmem:[#allocation14 + $0x18] sm:$0xff]
    %v796 = vld [vmem:[#allocation14 + $0x20] sm:$0xff]
    %v797 = vld [vmem:[#allocation14 + $0x28] sm:$0xff]
    %v798 = vld [vmem:[#allocation14 + $0x30] sm:$0xff]
    %v799 = vld [vmem:[#allocation14 + $0x38] sm:$0xff]
    %v800 = vld [vmem:[#allocation14 + $0x40] sm:$0xff]
    %v801 = vld [vmem:[#allocation14 + $0x48] sm:$0xff]
    %v802 = vld [vmem:[#allocation14 + $0x50] sm:$0xff]
    %v803 = vld [vmem:[#allocation14 + $0x58] sm:$0xff]
    %v804 = vld [vmem:[#allocation14 + $0x60] sm:$0xff]
    %v805 = vld [vmem:[#allocation14 + $0x68] sm:$0xff]
    %v806 = vld [vmem:[#allocation14 + $0x70] sm:$0xff]
    %v807 = vld [vmem:[#allocation14 + $0x78] sm:$0xff]
    %v808 = vld [vmem:[#allocation14 + $0x80] sm:$0xff]
    %v809 = vld [vmem:[#allocation14 + $0x88] sm:$0xff]
    %v810 = vld [vmem:[#allocation14 + $0x90] sm:$0xff]
    %v811 = vld [vmem:[#allocation14 + $0x98] sm:$0xff]
    %v812 = vld [vmem:[#allocation14 + $0xa0] sm:$0xff]
    %v813 = vld [vmem:[#allocation14 + $0xa8] sm:$0xff]
    %v814 = vld [vmem:[#allocation14 + $0xb0] sm:$0xff]
    %v815 = vld [vmem:[#allocation14 + $0xb8] sm:$0xff]
    %v816 = vld [vmem:[#allocation14 + $0xc0] sm:$0xff]
    %v817 = vld [vmem:[#allocation14 + $0xc8] sm:$0xff]
    %v818 = vld [vmem:[#allocation14 + $0xd0] sm:$0xff]
    %v819 = vld [vmem:[#allocation14 + $0xd8] sm:$0xff]
    %v820 = vld [vmem:[#allocation14 + $0xe0] sm:$0xff]
    %v821 = vld [vmem:[#allocation14 + $0xe8] sm:$0xff]
    %v822 = vld [vmem:[#allocation14 + $0xf0] sm:$0xff]
    %v823 = vld [vmem:[#allocation14 + $0xf8] sm:$0xff]
    %v824 = vld [vmem:[%s14] sm:$0x3]
    %v826 = vlaneseq
    %v827 = vshrl.u32 %v826, 7
    %v828 = vsub.s32 0, %v827
    %v829 = vrot.slane %v824, %v828
    %v830 = vlaneseq
    %v831 = vshrl.u32 %v830, 7
    %v832 = vsub.s32 1, %v831
    %v833 = vrot.slane %v824, %v832
    %836 = vmatprep.subr.mxu0 %v823
    %837 = vmatpush1.msra.mxu0 %v822
    %838 = vmatprep.subr.mxu0 %v821
    %839 = vmatpush1.msra.mxu0 %v820
    %840 = vmatprep.subr.mxu0 %v819
    %841 = vmatpush1.msra.mxu0 %v818
    %842 = vmatprep.subr.mxu0 %v817
    %843 = vmatpush1.msra.mxu0 %v816
    %844 = vmatprep.subr.mxu0 %v815
    %845 = vmatpush1.msra.mxu0 %v814
    %846 = vmatprep.subr.mxu0 %v813
    %847 = vmatpush1.msra.mxu0 %v812
    %848 = vmatprep.subr.mxu0 %v811
    %849 = vmatpush1.msra.mxu0 %v810
    %850 = vmatprep.subr.mxu0 %v809
    %851 = vmatpush1.msra.mxu0 %v808
    %852 = vmatprep.subr.mxu0 %v807
    %853 = vmatpush1.msra.mxu0 %v806
    %854 = vmatprep.subr.mxu0 %v805
    %855 = vmatpush1.msra.mxu0 %v804
    %856 = vmatprep.subr.mxu0 %v803
    %857 = vmatpush1.msra.mxu0 %v802
    %858 = vmatprep.subr.mxu0 %v801
    %859 = vmatpush1.msra.mxu0 %v800
    %860 = vmatprep.subr.mxu0 %v799
    %861 = vmatpush1.msra.mxu0 %v798
    %862 = vmatprep.subr.mxu0 %v797
    %863 = vmatpush1.msra.mxu0 %v796
    %864 = vmatprep.subr.mxu0 %v795
    %865 = vmatpush1.msra.mxu0 %v794
    %866 = vmatprep.subr.mxu0 %v793
    %867 = vmatpush1.msra.mxu0 %v792
    %868 = vmatprep.subr.mxu0 0.0
    %869 = vmatpush2.msra.mxu0 0.0
    %870 = vmatprep.subr.mxu0 0.0
    %871 = vmatpush2.msra.mxu0 0.0
    %872 = vmatprep.subr.mxu0 0.0
    %873 = vmatpush2.msra.mxu0 0.0
    %874 = vmatprep.subr.mxu0 0.0
    %875 = vmatpush2.msra.mxu0 0.0
    %876 = vmatprep.subr.mxu0 0.0
    %877 = vmatpush2.msra.mxu0 0.0
    %878 = vmatprep.subr.mxu0 0.0
    %879 = vmatpush2.msra.mxu0 0.0
    %880 = vmatprep.subr.mxu0 0.0
    %881 = vmatpush2.msra.mxu0 0.0
    %882 = vmatprep.subr.mxu0 0.0
    %883 = vmatpush2.msra.mxu0 0.0
    %884 = vmatprep.subr.mxu0 0.0
    %885 = vmatpush2.msra.mxu0 0.0
    %886 = vmatprep.subr.mxu0 0.0
    %887 = vmatpush2.msra.mxu0 0.0
    %888 = vmatprep.subr.mxu0 0.0
    %889 = vmatpush2.msra.mxu0 0.0
    %890 = vmatprep.subr.mxu0 0.0
    %891 = vmatpush2.msra.mxu0 0.0
    %892 = vmatprep.subr.mxu0 0.0
    %893 = vmatpush2.msra.mxu0 0.0
    %894 = vmatprep.subr.mxu0 0.0
    %895 = vmatpush2.msra.mxu0 0.0
    %896 = vmatprep.subr.mxu0 0.0
    %897 = vmatpush2.msra.mxu0 0.0
    %898 = vmatprep.subr.mxu0 0.0
    %899 = vmatpush2.msra.mxu0 0.0
    %900 = vmatprep.mubr.f32.mxu0 0.0
    %901 = vmatmul.mubr.f32.gmra.mxu0 %v791
    %v902 = vpop.f32.mrf.mxu0
    %v903 = vadd.f32 %v829, %v902
    %v904 = vpop.f32.mrf.mxu0
    %v905 = vadd.f32 %v833, %v904
    %906 = vdwg.mxu0
    %vm907 = vcmp.gt.f32.partialorder %v903, 0.0
    %vm908 = vcmp.gt.f32.partialorder %v905, 0.0
    %v909 = vmul.f32 %v903, 0.01
    %v910 = vmul.f32 %v905, 0.01
    %v911 = vsel %vm907, %v903, %v909
    %v912 = vsel %vm908, %v905, %v910
    %v913 = vld [vmem:[#allocation16] sm:$0xff]
    %v914 = vld [vmem:[#allocation16 + $0x8] sm:$0xff]
    %v915 = vld [vmem:[#allocation16 + $0x10] sm:$0xff]
    %v916 = vld [vmem:[#allocation16 + $0x18] sm:$0xff]
    %v917 = vld [vmem:[#allocation16 + $0x20] sm:$0xff]
    %v918 = vld [vmem:[#allocation16 + $0x28] sm:$0xff]
    %v919 = vld [vmem:[#allocation16 + $0x30] sm:$0xff]
    %v920 = vld [vmem:[#allocation16 + $0x38] sm:$0xff]
    %v921 = vld [vmem:[#allocation16 + $0x40] sm:$0xff]
    %v922 = vld [vmem:[#allocation16 + $0x48] sm:$0xff]
    %v923 = vld [vmem:[#allocation16 + $0x50] sm:$0xff]
    %v924 = vld [vmem:[#allocation16 + $0x58] sm:$0xff]
    %v925 = vld [vmem:[#allocation16 + $0x60] sm:$0xff]
    %v926 = vld [vmem:[#allocation16 + $0x68] sm:$0xff]
    %v927 = vld [vmem:[#allocation16 + $0x70] sm:$0xff]
    %v928 = vld [vmem:[#allocation16 + $0x78] sm:$0xff]
    %v929 = vld [vmem:[#allocation16 + $0x80] sm:$0xff]
    %v930 = vld [vmem:[#allocation16 + $0x88] sm:$0xff]
    %v931 = vld [vmem:[#allocation16 + $0x90] sm:$0xff]
    %v932 = vld [vmem:[#allocation16 + $0x98] sm:$0xff]
    %v933 = vld [vmem:[#allocation16 + $0xa0] sm:$0xff]
    %v934 = vld [vmem:[#allocation16 + $0xa8] sm:$0xff]
    %v935 = vld [vmem:[#allocation16 + $0xb0] sm:$0xff]
    %v936 = vld [vmem:[#allocation16 + $0xb8] sm:$0xff]
    %v937 = vld [vmem:[#allocation16 + $0xc0] sm:$0xff]
    %v938 = vld [vmem:[#allocation16 + $0xc8] sm:$0xff]
    %v939 = vld [vmem:[#allocation16 + $0xd0] sm:$0xff]
    %v940 = vld [vmem:[#allocation16 + $0xd8] sm:$0xff]
    %v941 = vld [vmem:[#allocation16 + $0xe0] sm:$0xff]
    %v942 = vld [vmem:[#allocation16 + $0xe8] sm:$0xff]
    %v943 = vld [vmem:[#allocation16 + $0xf0] sm:$0xff]
    %v944 = vld [vmem:[#allocation16 + $0xf8] sm:$0xff]
    %v945 = vld [vmem:[%s16] sm:$0x1]
    %v947 = vlaneseq
    %v948 = vshrl.u32 %v947, 7
    %v949 = vsub.s32 0, %v948
    %v950 = vrot.slane %v945, %v949
    %952 = vmatprep.subr.mxu0 0.0
    %953 = vmatpush1.msra.mxu0 %v928
    %954 = vmatprep.subr.mxu0 0.0
    %955 = vmatpush1.msra.mxu0 %v927
    %956 = vmatprep.subr.mxu0 0.0
    %957 = vmatpush1.msra.mxu0 %v926
    %958 = vmatprep.subr.mxu0 0.0
    %959 = vmatpush1.msra.mxu0 %v925
    %960 = vmatprep.subr.mxu0 0.0
    %961 = vmatpush1.msra.mxu0 %v924
    %962 = vmatprep.subr.mxu0 0.0
    %963 = vmatpush1.msra.mxu0 %v923
    %964 = vmatprep.subr.mxu0 0.0
    %965 = vmatpush1.msra.mxu0 %v922
    %966 = vmatprep.subr.mxu0 0.0
    %967 = vmatpush1.msra.mxu0 %v921
    %968 = vmatprep.subr.mxu0 0.0
    %969 = vmatpush1.msra.mxu0 %v920
    %970 = vmatprep.subr.mxu0 0.0
    %971 = vmatpush1.msra.mxu0 %v919
    %972 = vmatprep.subr.mxu0 0.0
    %973 = vmatpush1.msra.mxu0 %v918
    %974 = vmatprep.subr.mxu0 0.0
    %975 = vmatpush1.msra.mxu0 %v917
    %976 = vmatprep.subr.mxu0 0.0
    %977 = vmatpush1.msra.mxu0 %v916
    %978 = vmatprep.subr.mxu0 0.0
    %979 = vmatpush1.msra.mxu0 %v915
    %980 = vmatprep.subr.mxu0 0.0
    %981 = vmatpush1.msra.mxu0 %v914
    %982 = vmatprep.subr.mxu0 0.0
    %983 = vmatpush1.msra.mxu0 %v913
    %984 = vmatprep.subr.mxu0 0.0
    %985 = vmatpush2.msra.mxu0 %v944
    %986 = vmatprep.subr.mxu0 0.0
    %987 = vmatpush2.msra.mxu0 %v943
    %988 = vmatprep.subr.mxu0 0.0
    %989 = vmatpush2.msra.mxu0 %v942
    %990 = vmatprep.subr.mxu0 0.0
    %991 = vmatpush2.msra.mxu0 %v941
    %992 = vmatprep.subr.mxu0 0.0
    %993 = vmatpush2.msra.mxu0 %v940
    %994 = vmatprep.subr.mxu0 0.0
    %995 = vmatpush2.msra.mxu0 %v939
    %996 = vmatprep.subr.mxu0 0.0
    %997 = vmatpush2.msra.mxu0 %v938
    %998 = vmatprep.subr.mxu0 0.0
    %999 = vmatpush2.msra.mxu0 %v937
    %1000 = vmatprep.subr.mxu0 0.0
    %1001 = vmatpush2.msra.mxu0 %v936
    %1002 = vmatprep.subr.mxu0 0.0
    %1003 = vmatpush2.msra.mxu0 %v935
    %1004 = vmatprep.subr.mxu0 0.0
    %1005 = vmatpush2.msra.mxu0 %v934
    %1006 = vmatprep.subr.mxu0 0.0
    %1007 = vmatpush2.msra.mxu0 %v933
    %1008 = vmatprep.subr.mxu0 0.0
    %1009 = vmatpush2.msra.mxu0 %v932
    %1010 = vmatprep.subr.mxu0 0.0
    %1011 = vmatpush2.msra.mxu0 %v931
    %1012 = vmatprep.subr.mxu0 0.0
    %1013 = vmatpush2.msra.mxu0 %v930
    %1014 = vmatprep.subr.mxu0 0.0
    %1015 = vmatpush2.msra.mxu0 %v929
    %1016 = vmatprep.mubr.f32.mxu0 %v912
    %1017 = vmatmul.mubr.f32.gmra.mxu0 %v911
    %v1018 = vpop.f32.mrf.mxu0
    %v1019 = vadd.f32 %v950, %v1018
    %v1020 = vpop.f32.mrf.mxu0
    %1021 = vdwg.mxu0
    %1022 = vst [vmem:[#allocation17] sm:$0xff] %v1019
    // Predicated region
    $region106: #{tpu_custom_call.1} parent=1 // pred_check
      _
    $region107: #{tpu_custom_call.1} parent=1 // pred_check_branch
      %1024 = sbr.rel (0) target = $region109
    $region108: #{tpu_custom_call.1} parent=1 // pred_region
      %s1026 = ssub.s32 128, 128
      %1027 = vsyncadd [#allocation4], %s1026
      %s1029 = sshll.u32 [#allocation17], 4
      %s1030 = int_to_ptr.vmem [resolvable:$true] %s1029
      %1032 = dma.vmem_to_hbm [thread:$0]  %s1030, 128, %s17, [#allocation4]
    $region109: #{tpu_custom_call.1} parent=1 // pred_fallthru
      _
    // Predicated region
    $region110: #{tpu_custom_call.1} parent=1 // pred_check
      _
    $region111: #{tpu_custom_call.1} parent=1 // pred_check_branch
      %1034 = sbr.rel (0) target = $region113
    $region112: #{tpu_custom_call.1} parent=1 // pred_region
      %1035 = dma.done [#allocation4], 128
    $region113: #{tpu_custom_call.1} parent=1 // pred_fallthru
      _
    %1036 = vsyncpa [#allocation3], 1
    %1037 = vsyncpa [#allocation6], 1
    %1038 = vsyncpa [#allocation9], 1
    %1039 = vsyncpa [#allocation12], 1
    %1040 = vsyncpa [#allocation15], 1
    %1041 = vsyncpa [#allocation4], 1

</llo_original>
